<compile_context>
chip_gen: v6e
topology: v6e:2x2x1
jax: 0.10.0
libtpu: 0.0.40
codegen_flags: <defaults>
</compile_context>

<pallas_src>
import functools

import jax
import jax.numpy as jnp
from jax.experimental import pallas as pl
from jax.experimental.pallas import tpu as pltpu

CH_IN = 114
ENC_DIMS = [114, 60, 30, 10, 3]
DEC_DIMS = [3, 10, 30, 60, 114]
MEM_DIM = 120
FEA_DIM = 3
BN_EPS = 1e-5
SHRINK_THRES = 0.0025

PAD = 128           # lane-dense width for every activation / weight block
N_WBLK = 10         # 4 enc linears + M^T + M + 4 dec linears
N_BIAS = 8
MAX_BATCH = 4096    # whole batch must stay VMEM-resident (BN batch statistics)

# advisory cost estimate (real, unpadded op counts per row)
_FLOPS_PER_ROW = 2 * (
    sum(ENC_DIMS[i] * ENC_DIMS[i + 1] for i in range(4))
    + 2 * MEM_DIM * FEA_DIM
    + sum(DEC_DIMS[i] * DEC_DIMS[i + 1] for i in range(4))
)
_TRANS_PER_ROW = sum(ENC_DIMS[1:]) + sum(DEC_DIMS[1:]) + MEM_DIM  # tanh + exp


def memae_kernel(x_ref, w_ref, b_ref, out_ref, att_ref):
    """x_ref: (N, 128) zero-padded input.
    w_ref: (N_WBLK*128, 128) slab of zero-padded, pre-transposed (in,out)
           weights: blocks 0..3 encoder, 4 = M^T, 5 = M, 6..9 decoder.
    b_ref: (8, 128) zero-padded biases (rows 0..3 encoder, 4..7 decoder)."""

    def wblk(k):  # static, 128-aligned slice of the weight slab
        return w_ref[pl.ds(k * PAD, PAD), :]

    def lin_bn_tanh(h, wk, bk):
        y = jnp.dot(h, wblk(wk), preferred_element_type=jnp.float32)
        y = y + b_ref[pl.ds(bk, 1), :]
        mean = jnp.mean(y, axis=0, keepdims=True)
        yc = y - mean                                   # reuse centered tensor
        var = jnp.mean(yc * yc, axis=0, keepdims=True)  # biased variance
        return jnp.tanh(yc * jax.lax.rsqrt(var + BN_EPS))

    h = x_ref[...]                                      # (N,128), cols >=114 are 0

    # ---------------- encoder ----------------
    for k in range(4):
        h = lin_bn_tanh(h, k, k)                        # -> f: cols >= 3 exactly 0

    # ---------------- memory module ----------------
    logits = jnp.dot(h, wblk(4), preferred_element_type=jnp.float32)   # (N,128)
    lane = jax.lax.broadcasted_iota(jnp.int32, logits.shape, 1)
    logits = jnp.where(lane < MEM_DIM, logits, -1e30)   # mask padded memory slots
    logits = logits - jnp.max(logits, axis=1, keepdims=True)
    e = jnp.exp(logits)                                 # padded slots -> exactly 0
    att = e * pl.reciprocal(jnp.sum(e, axis=1, keepdims=True), approx=False)

    # hard_shrink_relu(att, lambd) = relu(att - l) * att / (|att - l| + 1e-12)
    shifted = att - SHRINK_THRES
    att = (jnp.maximum(shifted, 0.0) * att) * pl.reciprocal(
        jnp.abs(shifted) + 1e-12, approx=False)
    # F.normalize(p=1, dim=1): v / max(||v||_1, 1e-12)
    att = att * pl.reciprocal(
        jnp.maximum(jnp.sum(jnp.abs(att), axis=1, keepdims=True), 1e-12),
        approx=False)

    h = jnp.dot(att, wblk(5), preferred_element_type=jnp.float32)  # (N,128)

    # ---------------- decoder ----------------
    for k in range(4):
        h = lin_bn_tanh(h, 6 + k, 4 + k)                # -> (N,128), cols>=114 are 0

    out_ref[...] = h.astype(out_ref.dtype)              # lane-dense unmasked stores
    att_ref[...] = att.astype(att_ref.dtype)


def init_params(key):
    """Deterministic init mirroring PyTorch default shapes.
    Linear: W (out, in) ~ U(-1/sqrt(in), 1/sqrt(in)), b likewise.
    MemoryUnit: M (mem_dim, fea) ~ U(-1/sqrt(fea), 1/sqrt(fea))."""
    params = {}
    keys = jax.random.split(key, 32)
    ki = iter(range(32))

    def lin(kw, kb, fin, fout):
        s = 1.0 / jnp.sqrt(jnp.float32(fin))
        w = jax.random.uniform(kw, (fout, fin), jnp.float32, -s, s)
        b = jax.random.uniform(kb, (fout,), jnp.float32, -s, s)
        return w, b

    params["enc"] = [
        lin(keys[next(ki)], keys[next(ki)], ENC_DIMS[i], ENC_DIMS[i + 1])
        for i in range(4)
    ]
    params["dec"] = [
        lin(keys[next(ki)], keys[next(ki)], DEC_DIMS[i], DEC_DIMS[i + 1])
        for i in range(4)
    ]
    s = 1.0 / jnp.sqrt(jnp.float32(FEA_DIM))
    params["mem"] = jax.random.uniform(
        keys[next(ki)], (MEM_DIM, FEA_DIM), jnp.float32, -s, s
    )
    return params


def _pad2(a, rows, cols):
    return jnp.pad(a, ((0, rows - a.shape[0]), (0, cols - a.shape[1])))


@functools.partial(jax.jit, static_argnames=())
def memae_forward(x, params):
    n = x.shape[0]
    if n > MAX_BATCH:
        # BN batch statistics couple all rows; whole batch must be VMEM-resident.
        raise ValueError(f"batch {n} > MAX_BATCH={MAX_BATCH} for single-call MEMAE kernel")

    # ---- pack parameters into two lane-dense slabs (3 DMAs total) ----
    w_blocks, b_rows = [], []
    for w, b in params["enc"]:
        w_blocks.append(_pad2(w.T, PAD, PAD))            # (in,out) zero-padded
        b_rows.append(jnp.pad(b, (0, PAD - b.shape[0])))
    mem = params["mem"]
    w_blocks.append(_pad2(mem.T, PAD, PAD))              # M^T: (3,120) -> (128,128)
    w_blocks.append(_pad2(mem, PAD, PAD))                # M  : (120,3) -> (128,128)
    for w, b in params["dec"]:
        w_blocks.append(_pad2(w.T, PAD, PAD))
        b_rows.append(jnp.pad(b, (0, PAD - b.shape[0])))
    w_slab = jnp.concatenate(w_blocks, axis=0)           # (1280, 128)
    b_slab = jnp.stack(b_rows, axis=0)                   # (8, 128)

    x_pad = jnp.pad(x.astype(jnp.float32), ((0, 0), (0, PAD - CH_IN)))

    vmem = pl.BlockSpec(memory_space=pltpu.MemorySpace.VMEM)
    cost = pl.CostEstimate(
        flops=_FLOPS_PER_ROW * n,
        transcendentals=_TRANS_PER_ROW * n,
        bytes_accessed=4 * (3 * n * PAD + N_WBLK * PAD * PAD + N_BIAS * PAD),
    )

    out_p, att_p = pl.pallas_call(
        memae_kernel,
        out_shape=(
            jax.ShapeDtypeStruct((n, PAD), jnp.float32),   # lane-dense output slab
            jax.ShapeDtypeStruct((n, PAD), jnp.float32),   # lane-dense att slab
        ),
        in_specs=[vmem, vmem, vmem],
        out_specs=(vmem, vmem),
        compiler_params=pltpu.CompilerParams(
            vmem_limit_bytes=32 * 1024 * 1024,   # safe on v7x (64 MiB phys) & v5e/v6e
        ),
        cost_estimate=cost,
    )(x_pad, w_slab, b_slab)

    return {"output": out_p[:, :CH_IN], "att": att_p[:, :MEM_DIM]}


def memae_reference(x, params):
    """Pure-JAX reference for correctness checking."""
    def lbt(h, w, b):
        y = h @ w.T + b
        m = jnp.mean(y, axis=0, keepdims=True)
        v = jnp.mean((y - m) ** 2, axis=0, keepdims=True)
        return jnp.tanh((y - m) / jnp.sqrt(v + BN_EPS))

    h = x
    for w, b in params["enc"]:
        h = lbt(h, w, b)
    mem = params["mem"]
    att = jax.nn.softmax(h @ mem.T, axis=1)
    sh = att - SHRINK_THRES
    att = (jnp.maximum(sh, 0.0) * att) / (jnp.abs(sh) + 1e-12)
    att = att / jnp.maximum(jnp.sum(jnp.abs(att), axis=1, keepdims=True), 1e-12)
    h = att @ mem
    for w, b in params["dec"]:
        h = lbt(h, w, b)
    return {"output": h, "att": att}


if __name__ == "__main__":
    key = jax.random.PRNGKey(0)
    kx, kp = jax.random.split(key)
    batch = 8
    x = jax.random.normal(kx, (batch, CH_IN), jnp.float32)
    params = init_params(kp)

    res = memae_forward(x, params)
    jax.block_until_ready(res)

    ref = memae_reference(x, params)
    assert res["output"].shape == (batch, CH_IN)
    assert res["att"].shape == (batch, MEM_DIM)
    assert jnp.allclose(res["output"], ref["output"], atol=1e-4, rtol=1e-4)
    assert jnp.allclose(res["att"], ref["att"], atol=2e-5, rtol=1e-4)

    print("KERNEL_OK")
</pallas_src>

<mosaic_0001>
module attributes {stable_mosaic.version = 11 : i64} {
  func.func @memae_kernel(%arg0: memref<8x128xf32, #tpu.memory_space<vmem>>, %arg1: memref<1280x128xf32, #tpu.memory_space<vmem>>, %arg2: memref<8x128xf32, #tpu.memory_space<vmem>>, %arg3: memref<8x128xf32, #tpu.memory_space<vmem>>, %arg4: memref<8x128xf32, #tpu.memory_space<vmem>>) attributes {dimension_semantics = [], scalar_prefetch = 0 : i64, scratch_operands = 0 : i64, tpu.core_type = #tpu.core_type<tc>} {
    %c0 = arith.constant 0 : index
    %c0_0 = arith.constant 0 : index
    %0 = vector.load %arg0[%c0, %c0_0] : memref<8x128xf32, #tpu.memory_space<vmem>>, vector<8x128xf32>
    %c0_1 = arith.constant 0 : index
    %c0_2 = arith.constant 0 : index
    %1 = vector.load %arg1[%c0_1, %c0_2] : memref<1280x128xf32, #tpu.memory_space<vmem>>, vector<128x128xf32>
    %cst = arith.constant dense<0.000000e+00> : vector<8x128xf32>
    %2 = tpu.matmul %0, %1, %cst {dimension_numbers = #tpu.dot_dimension_numbers<[1], [0], [0], [1], [0, 0, 1, 1], [], []>} : vector<8x128xf32>, vector<128x128xf32>, vector<8x128xf32> -> vector<8x128xf32>
    %c0_3 = arith.constant 0 : index
    %c0_4 = arith.constant 0 : index
    %3 = vector.load %arg2[%c0_3, %c0_4] : memref<8x128xf32, #tpu.memory_space<vmem>>, vector<1x128xf32>
    %4 = vector.broadcast %3 : vector<1x128xf32> to vector<8x128xf32>
    %5 = arith.addf %2, %4 : vector<8x128xf32>
    %cst_5 = arith.constant dense<0.000000e+00> : vector<128xf32>
    %6 = vector.multi_reduction <add>, %5, %cst_5 [0] : vector<8x128xf32> to vector<128xf32>
    %7 = vector.shape_cast %6 : vector<128xf32> to vector<1x128xf32>
    %cst_6 = arith.constant 8.000000e+00 : f32
    %8 = vector.broadcast %cst_6 : f32 to vector<1x128xf32>
    %9 = arith.divf %7, %8 : vector<1x128xf32>
    %10 = vector.broadcast %9 : vector<1x128xf32> to vector<8x128xf32>
    %11 = arith.subf %5, %10 : vector<8x128xf32>
    %12 = arith.mulf %11, %11 : vector<8x128xf32>
    %cst_7 = arith.constant dense<0.000000e+00> : vector<128xf32>
    %13 = vector.multi_reduction <add>, %12, %cst_7 [0] : vector<8x128xf32> to vector<128xf32>
    %14 = vector.shape_cast %13 : vector<128xf32> to vector<1x128xf32>
    %cst_8 = arith.constant 8.000000e+00 : f32
    %15 = vector.broadcast %cst_8 : f32 to vector<1x128xf32>
    %16 = arith.divf %14, %15 : vector<1x128xf32>
    %cst_9 = arith.constant 9.99999974E-6 : f32
    %17 = vector.broadcast %cst_9 : f32 to vector<1x128xf32>
    %18 = arith.addf %16, %17 : vector<1x128xf32>
    %19 = math.rsqrt %18 : vector<1x128xf32>
    %20 = vector.broadcast %19 : vector<1x128xf32> to vector<8x128xf32>
    %21 = arith.mulf %11, %20 : vector<8x128xf32>
    %22 = math.tanh %21 : vector<8x128xf32>
    %c128 = arith.constant 128 : index
    %c0_10 = arith.constant 0 : index
    %23 = vector.load %arg1[%c128, %c0_10] : memref<1280x128xf32, #tpu.memory_space<vmem>>, vector<128x128xf32>
    %cst_11 = arith.constant dense<0.000000e+00> : vector<8x128xf32>
    %24 = tpu.matmul %22, %23, %cst_11 {dimension_numbers = #tpu.dot_dimension_numbers<[1], [0], [0], [1], [0, 0, 1, 1], [], []>} : vector<8x128xf32>, vector<128x128xf32>, vector<8x128xf32> -> vector<8x128xf32>
    %c1 = arith.constant 1 : index
    %c0_12 = arith.constant 0 : index
    %25 = vector.load %arg2[%c1, %c0_12] : memref<8x128xf32, #tpu.memory_space<vmem>>, vector<1x128xf32>
    %26 = vector.broadcast %25 : vector<1x128xf32> to vector<8x128xf32>
    %27 = arith.addf %24, %26 : vector<8x128xf32>
    %cst_13 = arith.constant dense<0.000000e+00> : vector<128xf32>
    %28 = vector.multi_reduction <add>, %27, %cst_13 [0] : vector<8x128xf32> to vector<128xf32>
    %29 = vector.shape_cast %28 : vector<128xf32> to vector<1x128xf32>
    %cst_14 = arith.constant 8.000000e+00 : f32
    %30 = vector.broadcast %cst_14 : f32 to vector<1x128xf32>
    %31 = arith.divf %29, %30 : vector<1x128xf32>
    %32 = vector.broadcast %31 : vector<1x128xf32> to vector<8x128xf32>
    %33 = arith.subf %27, %32 : vector<8x128xf32>
    %34 = arith.mulf %33, %33 : vector<8x128xf32>
    %cst_15 = arith.constant dense<0.000000e+00> : vector<128xf32>
    %35 = vector.multi_reduction <add>, %34, %cst_15 [0] : vector<8x128xf32> to vector<128xf32>
    %36 = vector.shape_cast %35 : vector<128xf32> to vector<1x128xf32>
    %cst_16 = arith.constant 8.000000e+00 : f32
    %37 = vector.broadcast %cst_16 : f32 to vector<1x128xf32>
    %38 = arith.divf %36, %37 : vector<1x128xf32>
    %cst_17 = arith.constant 9.99999974E-6 : f32
    %39 = vector.broadcast %cst_17 : f32 to vector<1x128xf32>
    %40 = arith.addf %38, %39 : vector<1x128xf32>
    %41 = math.rsqrt %40 : vector<1x128xf32>
    %42 = vector.broadcast %41 : vector<1x128xf32> to vector<8x128xf32>
    %43 = arith.mulf %33, %42 : vector<8x128xf32>
    %44 = math.tanh %43 : vector<8x128xf32>
    %c256 = arith.constant 256 : index
    %c0_18 = arith.constant 0 : index
    %45 = vector.load %arg1[%c256, %c0_18] : memref<1280x128xf32, #tpu.memory_space<vmem>>, vector<128x128xf32>
    %cst_19 = arith.constant dense<0.000000e+00> : vector<8x128xf32>
    %46 = tpu.matmul %44, %45, %cst_19 {dimension_numbers = #tpu.dot_dimension_numbers<[1], [0], [0], [1], [0, 0, 1, 1], [], []>} : vector<8x128xf32>, vector<128x128xf32>, vector<8x128xf32> -> vector<8x128xf32>
    %c2 = arith.constant 2 : index
    %c0_20 = arith.constant 0 : index
    %47 = vector.load %arg2[%c2, %c0_20] : memref<8x128xf32, #tpu.memory_space<vmem>>, vector<1x128xf32>
    %48 = vector.broadcast %47 : vector<1x128xf32> to vector<8x128xf32>
    %49 = arith.addf %46, %48 : vector<8x128xf32>
    %cst_21 = arith.constant dense<0.000000e+00> : vector<128xf32>
    %50 = vector.multi_reduction <add>, %49, %cst_21 [0] : vector<8x128xf32> to vector<128xf32>
    %51 = vector.shape_cast %50 : vector<128xf32> to vector<1x128xf32>
    %cst_22 = arith.constant 8.000000e+00 : f32
    %52 = vector.broadcast %cst_22 : f32 to vector<1x128xf32>
    %53 = arith.divf %51, %52 : vector<1x128xf32>
    %54 = vector.broadcast %53 : vector<1x128xf32> to vector<8x128xf32>
    %55 = arith.subf %49, %54 : vector<8x128xf32>
    %56 = arith.mulf %55, %55 : vector<8x128xf32>
    %cst_23 = arith.constant dense<0.000000e+00> : vector<128xf32>
    %57 = vector.multi_reduction <add>, %56, %cst_23 [0] : vector<8x128xf32> to vector<128xf32>
    %58 = vector.shape_cast %57 : vector<128xf32> to vector<1x128xf32>
    %cst_24 = arith.constant 8.000000e+00 : f32
    %59 = vector.broadcast %cst_24 : f32 to vector<1x128xf32>
    %60 = arith.divf %58, %59 : vector<1x128xf32>
    %cst_25 = arith.constant 9.99999974E-6 : f32
    %61 = vector.broadcast %cst_25 : f32 to vector<1x128xf32>
    %62 = arith.addf %60, %61 : vector<1x128xf32>
    %63 = math.rsqrt %62 : vector<1x128xf32>
    %64 = vector.broadcast %63 : vector<1x128xf32> to vector<8x128xf32>
    %65 = arith.mulf %55, %64 : vector<8x128xf32>
    %66 = math.tanh %65 : vector<8x128xf32>
    %c384 = arith.constant 384 : index
    %c0_26 = arith.constant 0 : index
    %67 = vector.load %arg1[%c384, %c0_26] : memref<1280x128xf32, #tpu.memory_space<vmem>>, vector<128x128xf32>
    %cst_27 = arith.constant dense<0.000000e+00> : vector<8x128xf32>
    %68 = tpu.matmul %66, %67, %cst_27 {dimension_numbers = #tpu.dot_dimension_numbers<[1], [0], [0], [1], [0, 0, 1, 1], [], []>} : vector<8x128xf32>, vector<128x128xf32>, vector<8x128xf32> -> vector<8x128xf32>
    %c3 = arith.constant 3 : index
    %c0_28 = arith.constant 0 : index
    %69 = vector.load %arg2[%c3, %c0_28] : memref<8x128xf32, #tpu.memory_space<vmem>>, vector<1x128xf32>
    %70 = vector.broadcast %69 : vector<1x128xf32> to vector<8x128xf32>
    %71 = arith.addf %68, %70 : vector<8x128xf32>
    %cst_29 = arith.constant dense<0.000000e+00> : vector<128xf32>
    %72 = vector.multi_reduction <add>, %71, %cst_29 [0] : vector<8x128xf32> to vector<128xf32>
    %73 = vector.shape_cast %72 : vector<128xf32> to vector<1x128xf32>
    %cst_30 = arith.constant 8.000000e+00 : f32
    %74 = vector.broadcast %cst_30 : f32 to vector<1x128xf32>
    %75 = arith.divf %73, %74 : vector<1x128xf32>
    %76 = vector.broadcast %75 : vector<1x128xf32> to vector<8x128xf32>
    %77 = arith.subf %71, %76 : vector<8x128xf32>
    %78 = arith.mulf %77, %77 : vector<8x128xf32>
    %cst_31 = arith.constant dense<0.000000e+00> : vector<128xf32>
    %79 = vector.multi_reduction <add>, %78, %cst_31 [0] : vector<8x128xf32> to vector<128xf32>
    %80 = vector.shape_cast %79 : vector<128xf32> to vector<1x128xf32>
    %cst_32 = arith.constant 8.000000e+00 : f32
    %81 = vector.broadcast %cst_32 : f32 to vector<1x128xf32>
    %82 = arith.divf %80, %81 : vector<1x128xf32>
    %cst_33 = arith.constant 9.99999974E-6 : f32
    %83 = vector.broadcast %cst_33 : f32 to vector<1x128xf32>
    %84 = arith.addf %82, %83 : vector<1x128xf32>
    %85 = math.rsqrt %84 : vector<1x128xf32>
    %86 = vector.broadcast %85 : vector<1x128xf32> to vector<8x128xf32>
    %87 = arith.mulf %77, %86 : vector<8x128xf32>
    %88 = math.tanh %87 : vector<8x128xf32>
    %c512 = arith.constant 512 : index
    %c0_34 = arith.constant 0 : index
    %89 = vector.load %arg1[%c512, %c0_34] : memref<1280x128xf32, #tpu.memory_space<vmem>>, vector<128x128xf32>
    %cst_35 = arith.constant dense<0.000000e+00> : vector<8x128xf32>
    %90 = tpu.matmul %88, %89, %cst_35 {dimension_numbers = #tpu.dot_dimension_numbers<[1], [0], [0], [1], [0, 0, 1, 1], [], []>} : vector<8x128xf32>, vector<128x128xf32>, vector<8x128xf32> -> vector<8x128xf32>
    %91 = tpu.iota {dimensions = array<i32: 1>} : vector<8x128xi32>
    %c120_i32 = arith.constant 120 : i32
    %92 = vector.broadcast %c120_i32 : i32 to vector<8x128xi32>
    %93 = arith.cmpi slt, %91, %92 : vector<8x128xi32>
    %cst_36 = arith.constant -1.000000e+30 : f32
    %94 = vector.broadcast %cst_36 : f32 to vector<8x128xf32>
    %95 = arith.select %93, %90, %94 : vector<8x128xi1>, vector<8x128xf32>
    %cst_37 = arith.constant dense<0xFF800000> : vector<8xf32>
    %96 = vector.multi_reduction <maximumf>, %95, %cst_37 [1] : vector<8x128xf32> to vector<8xf32>
    %97 = vector.shape_cast %96 : vector<8xf32> to vector<8x1xf32>
    %98 = vector.broadcast %97 : vector<8x1xf32> to vector<8x128xf32>
    %99 = arith.subf %95, %98 : vector<8x128xf32>
    %100 = math.exp %99 : vector<8x128xf32>
    %cst_38 = arith.constant dense<0.000000e+00> : vector<8xf32>
    %101 = vector.multi_reduction <add>, %100, %cst_38 [1] : vector<8x128xf32> to vector<8xf32>
    %102 = vector.shape_cast %101 : vector<8xf32> to vector<8x1xf32>
    %103 = tpu.reciprocal %102 : vector<8x1xf32> -> vector<8x1xf32>
    %104 = vector.broadcast %103 : vector<8x1xf32> to vector<8x128xf32>
    %105 = arith.mulf %100, %104 : vector<8x128xf32>
    %cst_39 = arith.constant 2.500000e-03 : f32
    %106 = vector.broadcast %cst_39 : f32 to vector<8x128xf32>
    %107 = arith.subf %105, %106 : vector<8x128xf32>
    %cst_40 = arith.constant 0.000000e+00 : f32
    %108 = vector.broadcast %cst_40 : f32 to vector<8x128xf32>
    %109 = arith.maximumf %107, %108 : vector<8x128xf32>
    %110 = arith.mulf %109, %105 : vector<8x128xf32>
    %111 = math.absf %107 : vector<8x128xf32>
    %cst_41 = arith.constant 9.99999996E-13 : f32
    %112 = vector.broadcast %cst_41 : f32 to vector<8x128xf32>
    %113 = arith.addf %111, %112 : vector<8x128xf32>
    %114 = tpu.reciprocal %113 : vector<8x128xf32> -> vector<8x128xf32>
    %115 = arith.mulf %110, %114 : vector<8x128xf32>
    %116 = math.absf %115 : vector<8x128xf32>
    %cst_42 = arith.constant dense<0.000000e+00> : vector<8xf32>
    %117 = vector.multi_reduction <add>, %116, %cst_42 [1] : vector<8x128xf32> to vector<8xf32>
    %118 = vector.shape_cast %117 : vector<8xf32> to vector<8x1xf32>
    %cst_43 = arith.constant 9.99999996E-13 : f32
    %119 = vector.broadcast %cst_43 : f32 to vector<8x1xf32>
    %120 = arith.maximumf %118, %119 : vector<8x1xf32>
    %121 = tpu.reciprocal %120 : vector<8x1xf32> -> vector<8x1xf32>
    %122 = vector.broadcast %121 : vector<8x1xf32> to vector<8x128xf32>
    %123 = arith.mulf %115, %122 : vector<8x128xf32>
    %c640 = arith.constant 640 : index
    %c0_44 = arith.constant 0 : index
    %124 = vector.load %arg1[%c640, %c0_44] : memref<1280x128xf32, #tpu.memory_space<vmem>>, vector<128x128xf32>
    %cst_45 = arith.constant dense<0.000000e+00> : vector<8x128xf32>
    %125 = tpu.matmul %123, %124, %cst_45 {dimension_numbers = #tpu.dot_dimension_numbers<[1], [0], [0], [1], [0, 0, 1, 1], [], []>} : vector<8x128xf32>, vector<128x128xf32>, vector<8x128xf32> -> vector<8x128xf32>
    %c768 = arith.constant 768 : index
    %c0_46 = arith.constant 0 : index
    %126 = vector.load %arg1[%c768, %c0_46] : memref<1280x128xf32, #tpu.memory_space<vmem>>, vector<128x128xf32>
    %cst_47 = arith.constant dense<0.000000e+00> : vector<8x128xf32>
    %127 = tpu.matmul %125, %126, %cst_47 {dimension_numbers = #tpu.dot_dimension_numbers<[1], [0], [0], [1], [0, 0, 1, 1], [], []>} : vector<8x128xf32>, vector<128x128xf32>, vector<8x128xf32> -> vector<8x128xf32>
    %c4 = arith.constant 4 : index
    %c0_48 = arith.constant 0 : index
    %128 = vector.load %arg2[%c4, %c0_48] : memref<8x128xf32, #tpu.memory_space<vmem>>, vector<1x128xf32>
    %129 = vector.broadcast %128 : vector<1x128xf32> to vector<8x128xf32>
    %130 = arith.addf %127, %129 : vector<8x128xf32>
    %cst_49 = arith.constant dense<0.000000e+00> : vector<128xf32>
    %131 = vector.multi_reduction <add>, %130, %cst_49 [0] : vector<8x128xf32> to vector<128xf32>
    %132 = vector.shape_cast %131 : vector<128xf32> to vector<1x128xf32>
    %cst_50 = arith.constant 8.000000e+00 : f32
    %133 = vector.broadcast %cst_50 : f32 to vector<1x128xf32>
    %134 = arith.divf %132, %133 : vector<1x128xf32>
    %135 = vector.broadcast %134 : vector<1x128xf32> to vector<8x128xf32>
    %136 = arith.subf %130, %135 : vector<8x128xf32>
    %137 = arith.mulf %136, %136 : vector<8x128xf32>
    %cst_51 = arith.constant dense<0.000000e+00> : vector<128xf32>
    %138 = vector.multi_reduction <add>, %137, %cst_51 [0] : vector<8x128xf32> to vector<128xf32>
    %139 = vector.shape_cast %138 : vector<128xf32> to vector<1x128xf32>
    %cst_52 = arith.constant 8.000000e+00 : f32
    %140 = vector.broadcast %cst_52 : f32 to vector<1x128xf32>
    %141 = arith.divf %139, %140 : vector<1x128xf32>
    %cst_53 = arith.constant 9.99999974E-6 : f32
    %142 = vector.broadcast %cst_53 : f32 to vector<1x128xf32>
    %143 = arith.addf %141, %142 : vector<1x128xf32>
    %144 = math.rsqrt %143 : vector<1x128xf32>
    %145 = vector.broadcast %144 : vector<1x128xf32> to vector<8x128xf32>
    %146 = arith.mulf %136, %145 : vector<8x128xf32>
    %147 = math.tanh %146 : vector<8x128xf32>
    %c896 = arith.constant 896 : index
    %c0_54 = arith.constant 0 : index
    %148 = vector.load %arg1[%c896, %c0_54] : memref<1280x128xf32, #tpu.memory_space<vmem>>, vector<128x128xf32>
    %cst_55 = arith.constant dense<0.000000e+00> : vector<8x128xf32>
    %149 = tpu.matmul %147, %148, %cst_55 {dimension_numbers = #tpu.dot_dimension_numbers<[1], [0], [0], [1], [0, 0, 1, 1], [], []>} : vector<8x128xf32>, vector<128x128xf32>, vector<8x128xf32> -> vector<8x128xf32>
    %c5 = arith.constant 5 : index
    %c0_56 = arith.constant 0 : index
    %150 = vector.load %arg2[%c5, %c0_56] : memref<8x128xf32, #tpu.memory_space<vmem>>, vector<1x128xf32>
    %151 = vector.broadcast %150 : vector<1x128xf32> to vector<8x128xf32>
    %152 = arith.addf %149, %151 : vector<8x128xf32>
    %cst_57 = arith.constant dense<0.000000e+00> : vector<128xf32>
    %153 = vector.multi_reduction <add>, %152, %cst_57 [0] : vector<8x128xf32> to vector<128xf32>
    %154 = vector.shape_cast %153 : vector<128xf32> to vector<1x128xf32>
    %cst_58 = arith.constant 8.000000e+00 : f32
    %155 = vector.broadcast %cst_58 : f32 to vector<1x128xf32>
    %156 = arith.divf %154, %155 : vector<1x128xf32>
    %157 = vector.broadcast %156 : vector<1x128xf32> to vector<8x128xf32>
    %158 = arith.subf %152, %157 : vector<8x128xf32>
    %159 = arith.mulf %158, %158 : vector<8x128xf32>
    %cst_59 = arith.constant dense<0.000000e+00> : vector<128xf32>
    %160 = vector.multi_reduction <add>, %159, %cst_59 [0] : vector<8x128xf32> to vector<128xf32>
    %161 = vector.shape_cast %160 : vector<128xf32> to vector<1x128xf32>
    %cst_60 = arith.constant 8.000000e+00 : f32
    %162 = vector.broadcast %cst_60 : f32 to vector<1x128xf32>
    %163 = arith.divf %161, %162 : vector<1x128xf32>
    %cst_61 = arith.constant 9.99999974E-6 : f32
    %164 = vector.broadcast %cst_61 : f32 to vector<1x128xf32>
    %165 = arith.addf %163, %164 : vector<1x128xf32>
    %166 = math.rsqrt %165 : vector<1x128xf32>
    %167 = vector.broadcast %166 : vector<1x128xf32> to vector<8x128xf32>
    %168 = arith.mulf %158, %167 : vector<8x128xf32>
    %169 = math.tanh %168 : vector<8x128xf32>
    %c1024 = arith.constant 1024 : index
    %c0_62 = arith.constant 0 : index
    %170 = vector.load %arg1[%c1024, %c0_62] : memref<1280x128xf32, #tpu.memory_space<vmem>>, vector<128x128xf32>
    %cst_63 = arith.constant dense<0.000000e+00> : vector<8x128xf32>
    %171 = tpu.matmul %169, %170, %cst_63 {dimension_numbers = #tpu.dot_dimension_numbers<[1], [0], [0], [1], [0, 0, 1, 1], [], []>} : vector<8x128xf32>, vector<128x128xf32>, vector<8x128xf32> -> vector<8x128xf32>
    %c6 = arith.constant 6 : index
    %c0_64 = arith.constant 0 : index
    %172 = vector.load %arg2[%c6, %c0_64] : memref<8x128xf32, #tpu.memory_space<vmem>>, vector<1x128xf32>
    %173 = vector.broadcast %172 : vector<1x128xf32> to vector<8x128xf32>
    %174 = arith.addf %171, %173 : vector<8x128xf32>
    %cst_65 = arith.constant dense<0.000000e+00> : vector<128xf32>
    %175 = vector.multi_reduction <add>, %174, %cst_65 [0] : vector<8x128xf32> to vector<128xf32>
    %176 = vector.shape_cast %175 : vector<128xf32> to vector<1x128xf32>
    %cst_66 = arith.constant 8.000000e+00 : f32
    %177 = vector.broadcast %cst_66 : f32 to vector<1x128xf32>
    %178 = arith.divf %176, %177 : vector<1x128xf32>
    %179 = vector.broadcast %178 : vector<1x128xf32> to vector<8x128xf32>
    %180 = arith.subf %174, %179 : vector<8x128xf32>
    %181 = arith.mulf %180, %180 : vector<8x128xf32>
    %cst_67 = arith.constant dense<0.000000e+00> : vector<128xf32>
    %182 = vector.multi_reduction <add>, %181, %cst_67 [0] : vector<8x128xf32> to vector<128xf32>
    %183 = vector.shape_cast %182 : vector<128xf32> to vector<1x128xf32>
    %cst_68 = arith.constant 8.000000e+00 : f32
    %184 = vector.broadcast %cst_68 : f32 to vector<1x128xf32>
    %185 = arith.divf %183, %184 : vector<1x128xf32>
    %cst_69 = arith.constant 9.99999974E-6 : f32
    %186 = vector.broadcast %cst_69 : f32 to vector<1x128xf32>
    %187 = arith.addf %185, %186 : vector<1x128xf32>
    %188 = math.rsqrt %187 : vector<1x128xf32>
    %189 = vector.broadcast %188 : vector<1x128xf32> to vector<8x128xf32>
    %190 = arith.mulf %180, %189 : vector<8x128xf32>
    %191 = math.tanh %190 : vector<8x128xf32>
    %c1152 = arith.constant 1152 : index
    %c0_70 = arith.constant 0 : index
    %192 = vector.load %arg1[%c1152, %c0_70] : memref<1280x128xf32, #tpu.memory_space<vmem>>, vector<128x128xf32>
    %cst_71 = arith.constant dense<0.000000e+00> : vector<8x128xf32>
    %193 = tpu.matmul %191, %192, %cst_71 {dimension_numbers = #tpu.dot_dimension_numbers<[1], [0], [0], [1], [0, 0, 1, 1], [], []>} : vector<8x128xf32>, vector<128x128xf32>, vector<8x128xf32> -> vector<8x128xf32>
    %c7 = arith.constant 7 : index
    %c0_72 = arith.constant 0 : index
    %194 = vector.load %arg2[%c7, %c0_72] : memref<8x128xf32, #tpu.memory_space<vmem>>, vector<1x128xf32>
    %195 = vector.broadcast %194 : vector<1x128xf32> to vector<8x128xf32>
    %196 = arith.addf %193, %195 : vector<8x128xf32>
    %cst_73 = arith.constant dense<0.000000e+00> : vector<128xf32>
    %197 = vector.multi_reduction <add>, %196, %cst_73 [0] : vector<8x128xf32> to vector<128xf32>
    %198 = vector.shape_cast %197 : vector<128xf32> to vector<1x128xf32>
    %cst_74 = arith.constant 8.000000e+00 : f32
    %199 = vector.broadcast %cst_74 : f32 to vector<1x128xf32>
    %200 = arith.divf %198, %199 : vector<1x128xf32>
    %201 = vector.broadcast %200 : vector<1x128xf32> to vector<8x128xf32>
    %202 = arith.subf %196, %201 : vector<8x128xf32>
    %203 = arith.mulf %202, %202 : vector<8x128xf32>
    %cst_75 = arith.constant dense<0.000000e+00> : vector<128xf32>
    %204 = vector.multi_reduction <add>, %203, %cst_75 [0] : vector<8x128xf32> to vector<128xf32>
    %205 = vector.shape_cast %204 : vector<128xf32> to vector<1x128xf32>
    %cst_76 = arith.constant 8.000000e+00 : f32
    %206 = vector.broadcast %cst_76 : f32 to vector<1x128xf32>
    %207 = arith.divf %205, %206 : vector<1x128xf32>
    %cst_77 = arith.constant 9.99999974E-6 : f32
    %208 = vector.broadcast %cst_77 : f32 to vector<1x128xf32>
    %209 = arith.addf %207, %208 : vector<1x128xf32>
    %210 = math.rsqrt %209 : vector<1x128xf32>
    %211 = vector.broadcast %210 : vector<1x128xf32> to vector<8x128xf32>
    %212 = arith.mulf %202, %211 : vector<8x128xf32>
    %213 = math.tanh %212 : vector<8x128xf32>
    %c0_78 = arith.constant 0 : index
    %c0_79 = arith.constant 0 : index
    %214 = vector.load %arg3[%c0_78, %c0_79] : memref<8x128xf32, #tpu.memory_space<vmem>>, vector<8x128xf32>
    tpu.vector_store %arg3[%c0_78, %c0_79], %213 {strides = array<i32>} : memref<8x128xf32, #tpu.memory_space<vmem>>, vector<8x128xf32>,
    %c0_80 = arith.constant 0 : index
    %c0_81 = arith.constant 0 : index
    %215 = vector.load %arg4[%c0_80, %c0_81] : memref<8x128xf32, #tpu.memory_space<vmem>>, vector<8x128xf32>
    tpu.vector_store %arg4[%c0_80, %c0_81], %123 {strides = array<i32>} : memref<8x128xf32, #tpu.memory_space<vmem>>, vector<8x128xf32>,
    return
  }
}

</mosaic_0001>

<llo_original>
// kernel: memae_forward.1
$region0: #{memae_forward.1}
  #allocation0 [shape = 'u32[]', space=smem, size = 0x4, offset = 0x4, fixed_abs, tag = 'smem constant byte address 0x4 - core index']
  #allocation1 [shape = 'u32[144,128]{1,0:T(1,128)}', space=vmem, size = 0x12000, scoped, tag = 'internal scratch']
  %s0 = inlined_call_operand.vmem [shape: f32[8,128], index: 0, kind: input, shape index: {}]
  %s1 = inlined_call_operand.vmem [shape: f32[1280,128], index: 1, kind: input, shape index: {}]
  %s2 = inlined_call_operand.vmem [shape: f32[8,128], index: 2, kind: input, shape index: {}]
  %s3 = inlined_call_operand.hbm [shape: f32[8,128], index: 3, kind: output, shape index: {0}]
  %s4 = inlined_call_operand.hbm [shape: f32[8,128], index: 4, kind: output, shape index: {1}]
  %5 = xla_tuple %s3, %s4
  %s6 = sld [smem:[#allocation0]]
  $region30: #{memae_forward.1} parent=0
    _
  %s8 = ssub.s32 1, %s6
  %s9 = scalar_select 0, %s8, %s6
  $region1: #{memae_forward.1} parent=0
    #allocation2 [shape = 'u8[4096]{0}', space=vmem, size = 0x1000, scoped, tag = 'output window, operand 0, single buffered']
    #allocation3 [shape = 's32[1]{0}', space=sflag, size = 0x4, scoped, tag = 'scoped memory for memae_forward.1']
    #allocation4 [shape = 'u8[4096]{0}', space=vmem, size = 0x1000, scoped, tag = 'output window, operand 1, single buffered']
    #allocation5 [shape = 's32[1]{0}', space=sflag, size = 0x4, scoped, tag = 'scoped memory for memae_forward.1']
    %10 = vsyncpa [#allocation3], 0
    %11 = vsyncpa [#allocation5], 0
    // Predicated region
    $region2: #{memae_forward.1} parent=1 // pred_check
      _
    $region3: #{memae_forward.1} parent=1 // pred_check_branch
      %13 = sbr.rel (0) target = $region5
    $region4: #{memae_forward.1} parent=1 // pred_region
      _
    $region5: #{memae_forward.1} parent=1 // pred_fallthru
      _
    // Predicated region
    $region6: #{memae_forward.1} parent=1 // pred_check
      _
    $region7: #{memae_forward.1} parent=1 // pred_check_branch
      %15 = sbr.rel (0) target = $region9
    $region8: #{memae_forward.1} parent=1 // pred_region
      _
    $region9: #{memae_forward.1} parent=1 // pred_fallthru
      _
    // Predicated region
    $region10: #{memae_forward.1} parent=1 // pred_check
      _
    $region11: #{memae_forward.1} parent=1 // pred_check_branch
      %17 = sbr.rel (0) target = $region13
    $region12: #{memae_forward.1} parent=1 // pred_region
      _
    $region13: #{memae_forward.1} parent=1 // pred_fallthru
      _
    %v18 = vld [vmem:[%s0] sm:$0xff]
    %v19 = vld [vmem:[%s1] sm:$0xff]
    %v20 = vld [vmem:[%s1 + $0x8] sm:$0xff]
    %v21 = vld [vmem:[%s1 + $0x10] sm:$0xff]
    %v22 = vld [vmem:[%s1 + $0x18] sm:$0xff]
    %v23 = vld [vmem:[%s1 + $0x20] sm:$0xff]
    %v24 = vld [vmem:[%s1 + $0x28] sm:$0xff]
    %v25 = vld [vmem:[%s1 + $0x30] sm:$0xff]
    %v26 = vld [vmem:[%s1 + $0x38] sm:$0xff]
    %v27 = vld [vmem:[%s1 + $0x40] sm:$0xff]
    %v28 = vld [vmem:[%s1 + $0x48] sm:$0xff]
    %v29 = vld [vmem:[%s1 + $0x50] sm:$0xff]
    %v30 = vld [vmem:[%s1 + $0x58] sm:$0xff]
    %v31 = vld [vmem:[%s1 + $0x60] sm:$0xff]
    %v32 = vld [vmem:[%s1 + $0x68] sm:$0xff]
    %v33 = vld [vmem:[%s1 + $0x70] sm:$0xff]
    %v34 = vld [vmem:[%s1 + $0x78] sm:$0xff]
    %v35 = vld [vmem:[%s2] sm:$0x1]
    %v36 = vlaneseq
    %v37 = vshrl.u32 %v36, 7
    %v38 = vsub.s32 0, %v37
    %v39 = vrot.slane %v35, %v38
    %40 = vmatprep.subr.mxu0 0.0
    %41 = vmatpush1.msra.mxu0 %v34
    %42 = vmatprep.subr.mxu0 0.0
    %43 = vmatpush1.msra.mxu0 %v33
    %44 = vmatprep.subr.mxu0 0.0
    %45 = vmatpush1.msra.mxu0 %v32
    %46 = vmatprep.subr.mxu0 0.0
    %47 = vmatpush1.msra.mxu0 %v31
    %48 = vmatprep.subr.mxu0 0.0
    %49 = vmatpush1.msra.mxu0 %v30
    %50 = vmatprep.subr.mxu0 0.0
    %51 = vmatpush1.msra.mxu0 %v29
    %52 = vmatprep.subr.mxu0 0.0
    %53 = vmatpush1.msra.mxu0 %v28
    %54 = vmatprep.subr.mxu0 0.0
    %55 = vmatpush1.msra.mxu0 %v27
    %56 = vmatprep.subr.mxu0 0.0
    %57 = vmatpush1.msra.mxu0 %v26
    %58 = vmatprep.subr.mxu0 0.0
    %59 = vmatpush1.msra.mxu0 %v25
    %60 = vmatprep.subr.mxu0 0.0
    %61 = vmatpush1.msra.mxu0 %v24
    %62 = vmatprep.subr.mxu0 0.0
    %63 = vmatpush1.msra.mxu0 %v23
    %64 = vmatprep.subr.mxu0 0.0
    %65 = vmatpush1.msra.mxu0 %v22
    %66 = vmatprep.subr.mxu0 0.0
    %67 = vmatpush1.msra.mxu0 %v21
    %68 = vmatprep.subr.mxu0 0.0
    %69 = vmatpush1.msra.mxu0 %v20
    %70 = vmatprep.subr.mxu0 0.0
    %71 = vmatpush1.msra.mxu0 %v19
    %72 = vmatprep.subr.mxu0 0.0
    %73 = vmatpush2.msra.mxu0 0.0
    %74 = vmatprep.subr.mxu0 0.0
    %75 = vmatpush2.msra.mxu0 0.0
    %76 = vmatprep.subr.mxu0 0.0
    %77 = vmatpush2.msra.mxu0 0.0
    %78 = vmatprep.subr.mxu0 0.0
    %79 = vmatpush2.msra.mxu0 0.0
    %80 = vmatprep.subr.mxu0 0.0
    %81 = vmatpush2.msra.mxu0 0.0
    %82 = vmatprep.subr.mxu0 0.0
    %83 = vmatpush2.msra.mxu0 0.0
    %84 = vmatprep.subr.mxu0 0.0
    %85 = vmatpush2.msra.mxu0 0.0
    %86 = vmatprep.subr.mxu0 0.0
    %87 = vmatpush2.msra.mxu0 0.0
    %88 = vmatprep.subr.mxu0 0.0
    %89 = vmatpush2.msra.mxu0 0.0
    %90 = vmatprep.subr.mxu0 0.0
    %91 = vmatpush2.msra.mxu0 0.0
    %92 = vmatprep.subr.mxu0 0.0
    %93 = vmatpush2.msra.mxu0 0.0
    %94 = vmatprep.subr.mxu0 0.0
    %95 = vmatpush2.msra.mxu0 0.0
    %96 = vmatprep.subr.mxu0 0.0
    %97 = vmatpush2.msra.mxu0 0.0
    %98 = vmatprep.subr.mxu0 0.0
    %99 = vmatpush2.msra.mxu0 0.0
    %100 = vmatprep.subr.mxu0 0.0
    %101 = vmatpush2.msra.mxu0 0.0
    %102 = vmatprep.subr.mxu0 0.0
    %103 = vmatpush2.msra.mxu0 0.0
    %104 = vmatprep.mubr.f32.mxu0 0.0
    %105 = vmatmul.mubr.f32.gmra.mxu0 %v18
    %v106 = vpop.f32.mrf.mxu0
    %v107 = vadd.f32 %v39, %v106
    %v108 = vpop.f32.mrf.mxu0
    %109 = vdwg.mxu0
    %v110 = vrot.slane %v107, 4
    %v111 = vadd.f32 %v107, %v110
    %v112 = vrot.slane %v111, 2
    %v113 = vadd.f32 %v111, %v112
    %v114 = vrot.slane %v113, 1
    %v115 = vadd.f32 %v113, %v114
    %v116 = vrcp.pop 8.0
    %v117 = vmul.f32 %v115, %v116
    %v118 = vsub.f32 %v107, %v117
    %v119 = vmul.f32 %v118, %v118
    %v120 = vrot.slane %v119, 4
    %v121 = vadd.f32 %v119, %v120
    %v122 = vrot.slane %v121, 2
    %v123 = vadd.f32 %v121, %v122
    %v124 = vrot.slane %v123, 1
    %v125 = vadd.f32 %v123, %v124
    %v126 = vmul.f32 %v125, %v116
    %v127 = vadd.f32 %v126, 1e-05
    %v128 = vrsqrt.pop %v127
    %v129 = vmul.f32 %v118, %v128
    %v130 = vtanh.pop %v129
    %v131 = vld [vmem:[%s1 + $0x80] sm:$0xff]
    %v132 = vld [vmem:[%s1 + $0x88] sm:$0xff]
    %v133 = vld [vmem:[%s1 + $0x90] sm:$0xff]
    %v134 = vld [vmem:[%s1 + $0x98] sm:$0xff]
    %v135 = vld [vmem:[%s1 + $0xa0] sm:$0xff]
    %v136 = vld [vmem:[%s1 + $0xa8] sm:$0xff]
    %v137 = vld [vmem:[%s1 + $0xb0] sm:$0xff]
    %v138 = vld [vmem:[%s1 + $0xb8] sm:$0xff]
    %v139 = vld [vmem:[%s1 + $0xc0] sm:$0xff]
    %v140 = vld [vmem:[%s1 + $0xc8] sm:$0xff]
    %v141 = vld [vmem:[%s1 + $0xd0] sm:$0xff]
    %v142 = vld [vmem:[%s1 + $0xd8] sm:$0xff]
    %v143 = vld [vmem:[%s1 + $0xe0] sm:$0xff]
    %v144 = vld [vmem:[%s1 + $0xe8] sm:$0xff]
    %v145 = vld [vmem:[%s1 + $0xf0] sm:$0xff]
    %v146 = vld [vmem:[%s1 + $0xf8] sm:$0xff]
    %v147 = vld [vmem:[%s2 + $0x1] sm:$0x1]
    %v148 = vlaneseq
    %v149 = vshrl.u32 %v148, 7
    %v150 = vsub.s32 0, %v149
    %v151 = vrot.slane %v147, %v150
    %152 = vmatprep.subr.mxu0 0.0
    %153 = vmatpush1.msra.mxu0 %v146
    %154 = vmatprep.subr.mxu0 0.0
    %155 = vmatpush1.msra.mxu0 %v145
    %156 = vmatprep.subr.mxu0 0.0
    %157 = vmatpush1.msra.mxu0 %v144
    %158 = vmatprep.subr.mxu0 0.0
    %159 = vmatpush1.msra.mxu0 %v143
    %160 = vmatprep.subr.mxu0 0.0
    %161 = vmatpush1.msra.mxu0 %v142
    %162 = vmatprep.subr.mxu0 0.0
    %163 = vmatpush1.msra.mxu0 %v141
    %164 = vmatprep.subr.mxu0 0.0
    %165 = vmatpush1.msra.mxu0 %v140
    %166 = vmatprep.subr.mxu0 0.0
    %167 = vmatpush1.msra.mxu0 %v139
    %168 = vmatprep.subr.mxu0 0.0
    %169 = vmatpush1.msra.mxu0 %v138
    %170 = vmatprep.subr.mxu0 0.0
    %171 = vmatpush1.msra.mxu0 %v137
    %172 = vmatprep.subr.mxu0 0.0
    %173 = vmatpush1.msra.mxu0 %v136
    %174 = vmatprep.subr.mxu0 0.0
    %175 = vmatpush1.msra.mxu0 %v135
    %176 = vmatprep.subr.mxu0 0.0
    %177 = vmatpush1.msra.mxu0 %v134
    %178 = vmatprep.subr.mxu0 0.0
    %179 = vmatpush1.msra.mxu0 %v133
    %180 = vmatprep.subr.mxu0 0.0
    %181 = vmatpush1.msra.mxu0 %v132
    %182 = vmatprep.subr.mxu0 0.0
    %183 = vmatpush1.msra.mxu0 %v131
    %184 = vmatprep.subr.mxu0 0.0
    %185 = vmatpush2.msra.mxu0 0.0
    %186 = vmatprep.subr.mxu0 0.0
    %187 = vmatpush2.msra.mxu0 0.0
    %188 = vmatprep.subr.mxu0 0.0
    %189 = vmatpush2.msra.mxu0 0.0
    %190 = vmatprep.subr.mxu0 0.0
    %191 = vmatpush2.msra.mxu0 0.0
    %192 = vmatprep.subr.mxu0 0.0
    %193 = vmatpush2.msra.mxu0 0.0
    %194 = vmatprep.subr.mxu0 0.0
    %195 = vmatpush2.msra.mxu0 0.0
    %196 = vmatprep.subr.mxu0 0.0
    %197 = vmatpush2.msra.mxu0 0.0
    %198 = vmatprep.subr.mxu0 0.0
    %199 = vmatpush2.msra.mxu0 0.0
    %200 = vmatprep.subr.mxu0 0.0
    %201 = vmatpush2.msra.mxu0 0.0
    %202 = vmatprep.subr.mxu0 0.0
    %203 = vmatpush2.msra.mxu0 0.0
    %204 = vmatprep.subr.mxu0 0.0
    %205 = vmatpush2.msra.mxu0 0.0
    %206 = vmatprep.subr.mxu0 0.0
    %207 = vmatpush2.msra.mxu0 0.0
    %208 = vmatprep.subr.mxu0 0.0
    %209 = vmatpush2.msra.mxu0 0.0
    %210 = vmatprep.subr.mxu0 0.0
    %211 = vmatpush2.msra.mxu0 0.0
    %212 = vmatprep.subr.mxu0 0.0
    %213 = vmatpush2.msra.mxu0 0.0
    %214 = vmatprep.subr.mxu0 0.0
    %215 = vmatpush2.msra.mxu0 0.0
    %216 = vmatprep.mubr.f32.mxu0 0.0
    %217 = vmatmul.mubr.f32.gmra.mxu0 %v130
    %v218 = vpop.f32.mrf.mxu0
    %v219 = vadd.f32 %v151, %v218
    %v220 = vpop.f32.mrf.mxu0
    %221 = vdwg.mxu0
    %v222 = vrot.slane %v219, 4
    %v223 = vadd.f32 %v219, %v222
    %v224 = vrot.slane %v223, 2
    %v225 = vadd.f32 %v223, %v224
    %v226 = vrot.slane %v225, 1
    %v227 = vadd.f32 %v225, %v226
    %v228 = vmul.f32 %v227, %v116
    %v229 = vsub.f32 %v219, %v228
    %v230 = vmul.f32 %v229, %v229
    %v231 = vrot.slane %v230, 4
    %v232 = vadd.f32 %v230, %v231
    %v233 = vrot.slane %v232, 2
    %v234 = vadd.f32 %v232, %v233
    %v235 = vrot.slane %v234, 1
    %v236 = vadd.f32 %v234, %v235
    %v237 = vmul.f32 %v236, %v116
    %v238 = vadd.f32 %v237, 1e-05
    %v239 = vrsqrt.pop %v238
    %v240 = vmul.f32 %v229, %v239
    %v241 = vtanh.pop %v240
    %v242 = vld [vmem:[%s1 + $0x100] sm:$0xff]
    %v243 = vld [vmem:[%s1 + $0x108] sm:$0xff]
    %v244 = vld [vmem:[%s1 + $0x110] sm:$0xff]
    %v245 = vld [vmem:[%s1 + $0x118] sm:$0xff]
    %v246 = vld [vmem:[%s1 + $0x120] sm:$0xff]
    %v247 = vld [vmem:[%s1 + $0x128] sm:$0xff]
    %v248 = vld [vmem:[%s1 + $0x130] sm:$0xff]
    %v249 = vld [vmem:[%s1 + $0x138] sm:$0xff]
    %v250 = vld [vmem:[%s1 + $0x140] sm:$0xff]
    %v251 = vld [vmem:[%s1 + $0x148] sm:$0xff]
    %v252 = vld [vmem:[%s1 + $0x150] sm:$0xff]
    %v253 = vld [vmem:[%s1 + $0x158] sm:$0xff]
    %v254 = vld [vmem:[%s1 + $0x160] sm:$0xff]
    %v255 = vld [vmem:[%s1 + $0x168] sm:$0xff]
    %v256 = vld [vmem:[%s1 + $0x170] sm:$0xff]
    %v257 = vld [vmem:[%s1 + $0x178] sm:$0xff]
    %v258 = vld [vmem:[%s2 + $0x2] sm:$0x1]
    %v259 = vlaneseq
    %v260 = vshrl.u32 %v259, 7
    %v261 = vsub.s32 0, %v260
    %v262 = vrot.slane %v258, %v261
    %263 = vmatprep.subr.mxu0 0.0
    %264 = vmatpush1.msra.mxu0 %v257
    %265 = vmatprep.subr.mxu0 0.0
    %266 = vmatpush1.msra.mxu0 %v256
    %267 = vmatprep.subr.mxu0 0.0
    %268 = vmatpush1.msra.mxu0 %v255
    %269 = vmatprep.subr.mxu0 0.0
    %270 = vmatpush1.msra.mxu0 %v254
    %271 = vmatprep.subr.mxu0 0.0
    %272 = vmatpush1.msra.mxu0 %v253
    %273 = vmatprep.subr.mxu0 0.0
    %274 = vmatpush1.msra.mxu0 %v252
    %275 = vmatprep.subr.mxu0 0.0
    %276 = vmatpush1.msra.mxu0 %v251
    %277 = vmatprep.subr.mxu0 0.0
    %278 = vmatpush1.msra.mxu0 %v250
    %279 = vmatprep.subr.mxu0 0.0
    %280 = vmatpush1.msra.mxu0 %v249
    %281 = vmatprep.subr.mxu0 0.0
    %282 = vmatpush1.msra.mxu0 %v248
    %283 = vmatprep.subr.mxu0 0.0
    %284 = vmatpush1.msra.mxu0 %v247
    %285 = vmatprep.subr.mxu0 0.0
    %286 = vmatpush1.msra.mxu0 %v246
    %287 = vmatprep.subr.mxu0 0.0
    %288 = vmatpush1.msra.mxu0 %v245
    %289 = vmatprep.subr.mxu0 0.0
    %290 = vmatpush1.msra.mxu0 %v244
    %291 = vmatprep.subr.mxu0 0.0
    %292 = vmatpush1.msra.mxu0 %v243
    %293 = vmatprep.subr.mxu0 0.0
    %294 = vmatpush1.msra.mxu0 %v242
    %295 = vmatprep.subr.mxu0 0.0
    %296 = vmatpush2.msra.mxu0 0.0
    %297 = vmatprep.subr.mxu0 0.0
    %298 = vmatpush2.msra.mxu0 0.0
    %299 = vmatprep.subr.mxu0 0.0
    %300 = vmatpush2.msra.mxu0 0.0
    %301 = vmatprep.subr.mxu0 0.0
    %302 = vmatpush2.msra.mxu0 0.0
    %303 = vmatprep.subr.mxu0 0.0
    %304 = vmatpush2.msra.mxu0 0.0
    %305 = vmatprep.subr.mxu0 0.0
    %306 = vmatpush2.msra.mxu0 0.0
    %307 = vmatprep.subr.mxu0 0.0
    %308 = vmatpush2.msra.mxu0 0.0
    %309 = vmatprep.subr.mxu0 0.0
    %310 = vmatpush2.msra.mxu0 0.0
    %311 = vmatprep.subr.mxu0 0.0
    %312 = vmatpush2.msra.mxu0 0.0
    %313 = vmatprep.subr.mxu0 0.0
    %314 = vmatpush2.msra.mxu0 0.0
    %315 = vmatprep.subr.mxu0 0.0
    %316 = vmatpush2.msra.mxu0 0.0
    %317 = vmatprep.subr.mxu0 0.0
    %318 = vmatpush2.msra.mxu0 0.0
    %319 = vmatprep.subr.mxu0 0.0
    %320 = vmatpush2.msra.mxu0 0.0
    %321 = vmatprep.subr.mxu0 0.0
    %322 = vmatpush2.msra.mxu0 0.0
    %323 = vmatprep.subr.mxu0 0.0
    %324 = vmatpush2.msra.mxu0 0.0
    %325 = vmatprep.subr.mxu0 0.0
    %326 = vmatpush2.msra.mxu0 0.0
    %327 = vmatprep.mubr.f32.mxu0 0.0
    %328 = vmatmul.mubr.f32.gmra.mxu0 %v241
    %v329 = vpop.f32.mrf.mxu0
    %v330 = vadd.f32 %v262, %v329
    %v331 = vpop.f32.mrf.mxu0
    %332 = vdwg.mxu0
    %v333 = vrot.slane %v330, 4
    %v334 = vadd.f32 %v330, %v333
    %v335 = vrot.slane %v334, 2
    %v336 = vadd.f32 %v334, %v335
    %v337 = vrot.slane %v336, 1
    %v338 = vadd.f32 %v336, %v337
    %v339 = vmul.f32 %v338, %v116
    %v340 = vsub.f32 %v330, %v339
    %v341 = vmul.f32 %v340, %v340
    %v342 = vrot.slane %v341, 4
    %v343 = vadd.f32 %v341, %v342
    %v344 = vrot.slane %v343, 2
    %v345 = vadd.f32 %v343, %v344
    %v346 = vrot.slane %v345, 1
    %v347 = vadd.f32 %v345, %v346
    %v348 = vmul.f32 %v347, %v116
    %v349 = vadd.f32 %v348, 1e-05
    %v350 = vrsqrt.pop %v349
    %v351 = vmul.f32 %v340, %v350
    %v352 = vtanh.pop %v351
    %v353 = vld [vmem:[%s1 + $0x180] sm:$0xff]
    %v354 = vld [vmem:[%s1 + $0x188] sm:$0xff]
    %v355 = vld [vmem:[%s1 + $0x190] sm:$0xff]
    %v356 = vld [vmem:[%s1 + $0x198] sm:$0xff]
    %v357 = vld [vmem:[%s1 + $0x1a0] sm:$0xff]
    %v358 = vld [vmem:[%s1 + $0x1a8] sm:$0xff]
    %v359 = vld [vmem:[%s1 + $0x1b0] sm:$0xff]
    %v360 = vld [vmem:[%s1 + $0x1b8] sm:$0xff]
    %v361 = vld [vmem:[%s1 + $0x1c0] sm:$0xff]
    %v362 = vld [vmem:[%s1 + $0x1c8] sm:$0xff]
    %v363 = vld [vmem:[%s1 + $0x1d0] sm:$0xff]
    %v364 = vld [vmem:[%s1 + $0x1d8] sm:$0xff]
    %v365 = vld [vmem:[%s1 + $0x1e0] sm:$0xff]
    %v366 = vld [vmem:[%s1 + $0x1e8] sm:$0xff]
    %v367 = vld [vmem:[%s1 + $0x1f0] sm:$0xff]
    %v368 = vld [vmem:[%s1 + $0x1f8] sm:$0xff]
    %v369 = vld [vmem:[%s2 + $0x3] sm:$0x1]
    %v370 = vlaneseq
    %v371 = vshrl.u32 %v370, 7
    %v372 = vsub.s32 0, %v371
    %v373 = vrot.slane %v369, %v372
    %374 = vmatprep.subr.mxu0 0.0
    %375 = vmatpush1.msra.mxu0 %v368
    %376 = vmatprep.subr.mxu0 0.0
    %377 = vmatpush1.msra.mxu0 %v367
    %378 = vmatprep.subr.mxu0 0.0
    %379 = vmatpush1.msra.mxu0 %v366
    %380 = vmatprep.subr.mxu0 0.0
    %381 = vmatpush1.msra.mxu0 %v365
    %382 = vmatprep.subr.mxu0 0.0
    %383 = vmatpush1.msra.mxu0 %v364
    %384 = vmatprep.subr.mxu0 0.0
    %385 = vmatpush1.msra.mxu0 %v363
    %386 = vmatprep.subr.mxu0 0.0
    %387 = vmatpush1.msra.mxu0 %v362
    %388 = vmatprep.subr.mxu0 0.0
    %389 = vmatpush1.msra.mxu0 %v361
    %390 = vmatprep.subr.mxu0 0.0
    %391 = vmatpush1.msra.mxu0 %v360
    %392 = vmatprep.subr.mxu0 0.0
    %393 = vmatpush1.msra.mxu0 %v359
    %394 = vmatprep.subr.mxu0 0.0
    %395 = vmatpush1.msra.mxu0 %v358
    %396 = vmatprep.subr.mxu0 0.0
    %397 = vmatpush1.msra.mxu0 %v357
    %398 = vmatprep.subr.mxu0 0.0
    %399 = vmatpush1.msra.mxu0 %v356
    %400 = vmatprep.subr.mxu0 0.0
    %401 = vmatpush1.msra.mxu0 %v355
    %402 = vmatprep.subr.mxu0 0.0
    %403 = vmatpush1.msra.mxu0 %v354
    %404 = vmatprep.subr.mxu0 0.0
    %405 = vmatpush1.msra.mxu0 %v353
    %406 = vmatprep.subr.mxu0 0.0
    %407 = vmatpush2.msra.mxu0 0.0
    %408 = vmatprep.subr.mxu0 0.0
    %409 = vmatpush2.msra.mxu0 0.0
    %410 = vmatprep.subr.mxu0 0.0
    %411 = vmatpush2.msra.mxu0 0.0
    %412 = vmatprep.subr.mxu0 0.0
    %413 = vmatpush2.msra.mxu0 0.0
    %414 = vmatprep.subr.mxu0 0.0
    %415 = vmatpush2.msra.mxu0 0.0
    %416 = vmatprep.subr.mxu0 0.0
    %417 = vmatpush2.msra.mxu0 0.0
    %418 = vmatprep.subr.mxu0 0.0
    %419 = vmatpush2.msra.mxu0 0.0
    %420 = vmatprep.subr.mxu0 0.0
    %421 = vmatpush2.msra.mxu0 0.0
    %422 = vmatprep.subr.mxu0 0.0
    %423 = vmatpush2.msra.mxu0 0.0
    %424 = vmatprep.subr.mxu0 0.0
    %425 = vmatpush2.msra.mxu0 0.0
    %426 = vmatprep.subr.mxu0 0.0
    %427 = vmatpush2.msra.mxu0 0.0
    %428 = vmatprep.subr.mxu0 0.0
    %429 = vmatpush2.msra.mxu0 0.0
    %430 = vmatprep.subr.mxu0 0.0
    %431 = vmatpush2.msra.mxu0 0.0
    %432 = vmatprep.subr.mxu0 0.0
    %433 = vmatpush2.msra.mxu0 0.0
    %434 = vmatprep.subr.mxu0 0.0
    %435 = vmatpush2.msra.mxu0 0.0
    %436 = vmatprep.subr.mxu0 0.0
    %437 = vmatpush2.msra.mxu0 0.0
    %438 = vmatprep.mubr.f32.mxu0 0.0
    %439 = vmatmul.mubr.f32.gmra.mxu0 %v352
    %v440 = vpop.f32.mrf.mxu0
    %v441 = vadd.f32 %v373, %v440
    %v442 = vpop.f32.mrf.mxu0
    %443 = vdwg.mxu0
    %v444 = vrot.slane %v441, 4
    %v445 = vadd.f32 %v441, %v444
    %v446 = vrot.slane %v445, 2
    %v447 = vadd.f32 %v445, %v446
    %v448 = vrot.slane %v447, 1
    %v449 = vadd.f32 %v447, %v448
    %v450 = vmul.f32 %v449, %v116
    %v451 = vsub.f32 %v441, %v450
    %v452 = vmul.f32 %v451, %v451
    %v453 = vrot.slane %v452, 4
    %v454 = vadd.f32 %v452, %v453
    %v455 = vrot.slane %v454, 2
    %v456 = vadd.f32 %v454, %v455
    %v457 = vrot.slane %v456, 1
    %v458 = vadd.f32 %v456, %v457
    %v459 = vmul.f32 %v458, %v116
    %v460 = vadd.f32 %v459, 1e-05
    %v461 = vrsqrt.pop %v460
    %v462 = vmul.f32 %v451, %v461
    %v463 = vtanh.pop %v462
    %v464 = vld [vmem:[%s1 + $0x200] sm:$0xff]
    %v465 = vld [vmem:[%s1 + $0x208] sm:$0xff]
    %v466 = vld [vmem:[%s1 + $0x210] sm:$0xff]
    %v467 = vld [vmem:[%s1 + $0x218] sm:$0xff]
    %v468 = vld [vmem:[%s1 + $0x220] sm:$0xff]
    %v469 = vld [vmem:[%s1 + $0x228] sm:$0xff]
    %v470 = vld [vmem:[%s1 + $0x230] sm:$0xff]
    %v471 = vld [vmem:[%s1 + $0x238] sm:$0xff]
    %v472 = vld [vmem:[%s1 + $0x240] sm:$0xff]
    %v473 = vld [vmem:[%s1 + $0x248] sm:$0xff]
    %v474 = vld [vmem:[%s1 + $0x250] sm:$0xff]
    %v475 = vld [vmem:[%s1 + $0x258] sm:$0xff]
    %v476 = vld [vmem:[%s1 + $0x260] sm:$0xff]
    %v477 = vld [vmem:[%s1 + $0x268] sm:$0xff]
    %v478 = vld [vmem:[%s1 + $0x270] sm:$0xff]
    %v479 = vld [vmem:[%s1 + $0x278] sm:$0xff]
    %480 = vmatprep.subr.mxu0 0.0
    %481 = vmatpush1.msra.mxu0 %v479
    %482 = vmatprep.subr.mxu0 0.0
    %483 = vmatpush1.msra.mxu0 %v478
    %484 = vmatprep.subr.mxu0 0.0
    %485 = vmatpush1.msra.mxu0 %v477
    %486 = vmatprep.subr.mxu0 0.0
    %487 = vmatpush1.msra.mxu0 %v476
    %488 = vmatprep.subr.mxu0 0.0
    %489 = vmatpush1.msra.mxu0 %v475
    %490 = vmatprep.subr.mxu0 0.0
    %491 = vmatpush1.msra.mxu0 %v474
    %492 = vmatprep.subr.mxu0 0.0
    %493 = vmatpush1.msra.mxu0 %v473
    %494 = vmatprep.subr.mxu0 0.0
    %495 = vmatpush1.msra.mxu0 %v472
    %496 = vmatprep.subr.mxu0 0.0
    %497 = vmatpush1.msra.mxu0 %v471
    %498 = vmatprep.subr.mxu0 0.0
    %499 = vmatpush1.msra.mxu0 %v470
    %500 = vmatprep.subr.mxu0 0.0
    %501 = vmatpush1.msra.mxu0 %v469
    %502 = vmatprep.subr.mxu0 0.0
    %503 = vmatpush1.msra.mxu0 %v468
    %504 = vmatprep.subr.mxu0 0.0
    %505 = vmatpush1.msra.mxu0 %v467
    %506 = vmatprep.subr.mxu0 0.0
    %507 = vmatpush1.msra.mxu0 %v466
    %508 = vmatprep.subr.mxu0 0.0
    %509 = vmatpush1.msra.mxu0 %v465
    %510 = vmatprep.subr.mxu0 0.0
    %511 = vmatpush1.msra.mxu0 %v464
    %512 = vmatprep.subr.mxu0 0.0
    %513 = vmatpush2.msra.mxu0 0.0
    %514 = vmatprep.subr.mxu0 0.0
    %515 = vmatpush2.msra.mxu0 0.0
    %516 = vmatprep.subr.mxu0 0.0
    %517 = vmatpush2.msra.mxu0 0.0
    %518 = vmatprep.subr.mxu0 0.0
    %519 = vmatpush2.msra.mxu0 0.0
    %520 = vmatprep.subr.mxu0 0.0
    %521 = vmatpush2.msra.mxu0 0.0
    %522 = vmatprep.subr.mxu0 0.0
    %523 = vmatpush2.msra.mxu0 0.0
    %524 = vmatprep.subr.mxu0 0.0
    %525 = vmatpush2.msra.mxu0 0.0
    %526 = vmatprep.subr.mxu0 0.0
    %527 = vmatpush2.msra.mxu0 0.0
    %528 = vmatprep.subr.mxu0 0.0
    %529 = vmatpush2.msra.mxu0 0.0
    %530 = vmatprep.subr.mxu0 0.0
    %531 = vmatpush2.msra.mxu0 0.0
    %532 = vmatprep.subr.mxu0 0.0
    %533 = vmatpush2.msra.mxu0 0.0
    %534 = vmatprep.subr.mxu0 0.0
    %535 = vmatpush2.msra.mxu0 0.0
    %536 = vmatprep.subr.mxu0 0.0
    %537 = vmatpush2.msra.mxu0 0.0
    %538 = vmatprep.subr.mxu0 0.0
    %539 = vmatpush2.msra.mxu0 0.0
    %540 = vmatprep.subr.mxu0 0.0
    %541 = vmatpush2.msra.mxu0 0.0
    %542 = vmatprep.subr.mxu0 0.0
    %543 = vmatpush2.msra.mxu0 0.0
    %544 = vmatprep.mubr.f32.mxu0 0.0
    %545 = vmatmul.mubr.f32.gmra.mxu0 %v463
    %v546 = vpop.f32.mrf.mxu0
    %v547 = vadd.f32 0.0, %v546
    %v548 = vpop.f32.mrf.mxu0
    %549 = vdwg.mxu0
    %v550 = vlaneseq
    %v551 = vand.u32 %v550, 127
    %vm552 = vcmp.lt.s32.totalorder %v551, 120
    %v553 = vsel %vm552, %v547, -1e+30
    %554 = vmax.xlane.f32.xlu0 %v553
    %v555 = vpop.xlane.xlu0 %554
    %v556 = vsub.f32 %v553, %v555
    %v557 = vmul.f32 %v556, 1.442695
    %v558 = vpow.pop %v557
    %559 = vadd.xlane.f32.xlu0 %v558
    %v560 = vpop.xlane.xlu0 %559
    %v561 = vrcp.pop %v560
    %v562 = vmul.f32 %v558, %v561
    %v563 = vsub.f32 %v562, 0.0025
    %v564 = vmax.f32 %v563, 0.0
    %v565 = vmul.f32 %v564, %v562
    %v566 = vand.u32 2147483647, %v563
    %v567 = vadd.f32 %v566, 1e-12
    %v568 = vrcp.pop %v567
    %v569 = vmul.f32 %v565, %v568
    %v570 = vand.u32 2147483647, %v569
    %571 = vadd.xlane.f32.xlu0 %v570
    %v572 = vpop.xlane.xlu0 %571
    %v573 = vmax.f32 %v572, 1e-12
    %v574 = vrcp.pop %v573
    %v575 = vmul.f32 %v569, %v574
    %v576 = vld [vmem:[%s1 + $0x280] sm:$0xff]
    %v577 = vld [vmem:[%s1 + $0x288] sm:$0xff]
    %v578 = vld [vmem:[%s1 + $0x290] sm:$0xff]
    %v579 = vld [vmem:[%s1 + $0x298] sm:$0xff]
    %v580 = vld [vmem:[%s1 + $0x2a0] sm:$0xff]
    %v581 = vld [vmem:[%s1 + $0x2a8] sm:$0xff]
    %v582 = vld [vmem:[%s1 + $0x2b0] sm:$0xff]
    %v583 = vld [vmem:[%s1 + $0x2b8] sm:$0xff]
    %v584 = vld [vmem:[%s1 + $0x2c0] sm:$0xff]
    %v585 = vld [vmem:[%s1 + $0x2c8] sm:$0xff]
    %v586 = vld [vmem:[%s1 + $0x2d0] sm:$0xff]
    %v587 = vld [vmem:[%s1 + $0x2d8] sm:$0xff]
    %v588 = vld [vmem:[%s1 + $0x2e0] sm:$0xff]
    %v589 = vld [vmem:[%s1 + $0x2e8] sm:$0xff]
    %v590 = vld [vmem:[%s1 + $0x2f0] sm:$0xff]
    %v591 = vld [vmem:[%s1 + $0x2f8] sm:$0xff]
    %592 = vmatprep.subr.mxu0 0.0
    %593 = vmatpush1.msra.mxu0 %v591
    %594 = vmatprep.subr.mxu0 0.0
    %595 = vmatpush1.msra.mxu0 %v590
    %596 = vmatprep.subr.mxu0 0.0
    %597 = vmatpush1.msra.mxu0 %v589
    %598 = vmatprep.subr.mxu0 0.0
    %599 = vmatpush1.msra.mxu0 %v588
    %600 = vmatprep.subr.mxu0 0.0
    %601 = vmatpush1.msra.mxu0 %v587
    %602 = vmatprep.subr.mxu0 0.0
    %603 = vmatpush1.msra.mxu0 %v586
    %604 = vmatprep.subr.mxu0 0.0
    %605 = vmatpush1.msra.mxu0 %v585
    %606 = vmatprep.subr.mxu0 0.0
    %607 = vmatpush1.msra.mxu0 %v584
    %608 = vmatprep.subr.mxu0 0.0
    %609 = vmatpush1.msra.mxu0 %v583
    %610 = vmatprep.subr.mxu0 0.0
    %611 = vmatpush1.msra.mxu0 %v582
    %612 = vmatprep.subr.mxu0 0.0
    %613 = vmatpush1.msra.mxu0 %v581
    %614 = vmatprep.subr.mxu0 0.0
    %615 = vmatpush1.msra.mxu0 %v580
    %616 = vmatprep.subr.mxu0 0.0
    %617 = vmatpush1.msra.mxu0 %v579
    %618 = vmatprep.subr.mxu0 0.0
    %619 = vmatpush1.msra.mxu0 %v578
    %620 = vmatprep.subr.mxu0 0.0
    %621 = vmatpush1.msra.mxu0 %v577
    %622 = vmatprep.subr.mxu0 0.0
    %623 = vmatpush1.msra.mxu0 %v576
    %624 = vmatprep.subr.mxu0 0.0
    %625 = vmatpush2.msra.mxu0 0.0
    %626 = vmatprep.subr.mxu0 0.0
    %627 = vmatpush2.msra.mxu0 0.0
    %628 = vmatprep.subr.mxu0 0.0
    %629 = vmatpush2.msra.mxu0 0.0
    %630 = vmatprep.subr.mxu0 0.0
    %631 = vmatpush2.msra.mxu0 0.0
    %632 = vmatprep.subr.mxu0 0.0
    %633 = vmatpush2.msra.mxu0 0.0
    %634 = vmatprep.subr.mxu0 0.0
    %635 = vmatpush2.msra.mxu0 0.0
    %636 = vmatprep.subr.mxu0 0.0
    %637 = vmatpush2.msra.mxu0 0.0
    %638 = vmatprep.subr.mxu0 0.0
    %639 = vmatpush2.msra.mxu0 0.0
    %640 = vmatprep.subr.mxu0 0.0
    %641 = vmatpush2.msra.mxu0 0.0
    %642 = vmatprep.subr.mxu0 0.0
    %643 = vmatpush2.msra.mxu0 0.0
    %644 = vmatprep.subr.mxu0 0.0
    %645 = vmatpush2.msra.mxu0 0.0
    %646 = vmatprep.subr.mxu0 0.0
    %647 = vmatpush2.msra.mxu0 0.0
    %648 = vmatprep.subr.mxu0 0.0
    %649 = vmatpush2.msra.mxu0 0.0
    %650 = vmatprep.subr.mxu0 0.0
    %651 = vmatpush2.msra.mxu0 0.0
    %652 = vmatprep.subr.mxu0 0.0
    %653 = vmatpush2.msra.mxu0 0.0
    %654 = vmatprep.subr.mxu0 0.0
    %655 = vmatpush2.msra.mxu0 0.0
    %656 = vmatprep.mubr.f32.mxu0 0.0
    %657 = vmatmul.mubr.f32.gmra.mxu0 %v575
    %v658 = vpop.f32.mrf.mxu0
    %v659 = vadd.f32 0.0, %v658
    %v660 = vpop.f32.mrf.mxu0
    %661 = vdwg.mxu0
    %v662 = vld [vmem:[%s1 + $0x300] sm:$0xff]
    %v663 = vld [vmem:[%s1 + $0x308] sm:$0xff]
    %v664 = vld [vmem:[%s1 + $0x310] sm:$0xff]
    %v665 = vld [vmem:[%s1 + $0x318] sm:$0xff]
    %v666 = vld [vmem:[%s1 + $0x320] sm:$0xff]
    %v667 = vld [vmem:[%s1 + $0x328] sm:$0xff]
    %v668 = vld [vmem:[%s1 + $0x330] sm:$0xff]
    %v669 = vld [vmem:[%s1 + $0x338] sm:$0xff]
    %v670 = vld [vmem:[%s1 + $0x340] sm:$0xff]
    %v671 = vld [vmem:[%s1 + $0x348] sm:$0xff]
    %v672 = vld [vmem:[%s1 + $0x350] sm:$0xff]
    %v673 = vld [vmem:[%s1 + $0x358] sm:$0xff]
    %v674 = vld [vmem:[%s1 + $0x360] sm:$0xff]
    %v675 = vld [vmem:[%s1 + $0x368] sm:$0xff]
    %v676 = vld [vmem:[%s1 + $0x370] sm:$0xff]
    %v677 = vld [vmem:[%s1 + $0x378] sm:$0xff]
    %v678 = vld [vmem:[%s2 + $0x4] sm:$0x1]
    %v679 = vlaneseq
    %v680 = vshrl.u32 %v679, 7
    %v681 = vsub.s32 0, %v680
    %v682 = vrot.slane %v678, %v681
    %683 = vmatprep.subr.mxu0 0.0
    %684 = vmatpush1.msra.mxu0 %v677
    %685 = vmatprep.subr.mxu0 0.0
    %686 = vmatpush1.msra.mxu0 %v676
    %687 = vmatprep.subr.mxu0 0.0
    %688 = vmatpush1.msra.mxu0 %v675
    %689 = vmatprep.subr.mxu0 0.0
    %690 = vmatpush1.msra.mxu0 %v674
    %691 = vmatprep.subr.mxu0 0.0
    %692 = vmatpush1.msra.mxu0 %v673
    %693 = vmatprep.subr.mxu0 0.0
    %694 = vmatpush1.msra.mxu0 %v672
    %695 = vmatprep.subr.mxu0 0.0
    %696 = vmatpush1.msra.mxu0 %v671
    %697 = vmatprep.subr.mxu0 0.0
    %698 = vmatpush1.msra.mxu0 %v670
    %699 = vmatprep.subr.mxu0 0.0
    %700 = vmatpush1.msra.mxu0 %v669
    %701 = vmatprep.subr.mxu0 0.0
    %702 = vmatpush1.msra.mxu0 %v668
    %703 = vmatprep.subr.mxu0 0.0
    %704 = vmatpush1.msra.mxu0 %v667
    %705 = vmatprep.subr.mxu0 0.0
    %706 = vmatpush1.msra.mxu0 %v666
    %707 = vmatprep.subr.mxu0 0.0
    %708 = vmatpush1.msra.mxu0 %v665
    %709 = vmatprep.subr.mxu0 0.0
    %710 = vmatpush1.msra.mxu0 %v664
    %711 = vmatprep.subr.mxu0 0.0
    %712 = vmatpush1.msra.mxu0 %v663
    %713 = vmatprep.subr.mxu0 0.0
    %714 = vmatpush1.msra.mxu0 %v662
    %715 = vmatprep.subr.mxu0 0.0
    %716 = vmatpush2.msra.mxu0 0.0
    %717 = vmatprep.subr.mxu0 0.0
    %718 = vmatpush2.msra.mxu0 0.0
    %719 = vmatprep.subr.mxu0 0.0
    %720 = vmatpush2.msra.mxu0 0.0
    %721 = vmatprep.subr.mxu0 0.0
    %722 = vmatpush2.msra.mxu0 0.0
    %723 = vmatprep.subr.mxu0 0.0
    %724 = vmatpush2.msra.mxu0 0.0
    %725 = vmatprep.subr.mxu0 0.0
    %726 = vmatpush2.msra.mxu0 0.0
    %727 = vmatprep.subr.mxu0 0.0
    %728 = vmatpush2.msra.mxu0 0.0
    %729 = vmatprep.subr.mxu0 0.0
    %730 = vmatpush2.msra.mxu0 0.0
    %731 = vmatprep.subr.mxu0 0.0
    %732 = vmatpush2.msra.mxu0 0.0
    %733 = vmatprep.subr.mxu0 0.0
    %734 = vmatpush2.msra.mxu0 0.0
    %735 = vmatprep.subr.mxu0 0.0
    %736 = vmatpush2.msra.mxu0 0.0
    %737 = vmatprep.subr.mxu0 0.0
    %738 = vmatpush2.msra.mxu0 0.0
    %739 = vmatprep.subr.mxu0 0.0
    %740 = vmatpush2.msra.mxu0 0.0
    %741 = vmatprep.subr.mxu0 0.0
    %742 = vmatpush2.msra.mxu0 0.0
    %743 = vmatprep.subr.mxu0 0.0
    %744 = vmatpush2.msra.mxu0 0.0
    %745 = vmatprep.subr.mxu0 0.0
    %746 = vmatpush2.msra.mxu0 0.0
    %747 = vmatprep.mubr.f32.mxu0 0.0
    %748 = vmatmul.mubr.f32.gmra.mxu0 %v659
    %v749 = vpop.f32.mrf.mxu0
    %v750 = vadd.f32 %v682, %v749
    %v751 = vpop.f32.mrf.mxu0
    %752 = vdwg.mxu0
    %v753 = vrot.slane %v750, 4
    %v754 = vadd.f32 %v750, %v753
    %v755 = vrot.slane %v754, 2
    %v756 = vadd.f32 %v754, %v755
    %v757 = vrot.slane %v756, 1
    %v758 = vadd.f32 %v756, %v757
    %v759 = vmul.f32 %v758, %v116
    %v760 = vsub.f32 %v750, %v759
    %v761 = vmul.f32 %v760, %v760
    %v762 = vrot.slane %v761, 4
    %v763 = vadd.f32 %v761, %v762
    %v764 = vrot.slane %v763, 2
    %v765 = vadd.f32 %v763, %v764
    %v766 = vrot.slane %v765, 1
    %v767 = vadd.f32 %v765, %v766
    %v768 = vmul.f32 %v767, %v116
    %v769 = vadd.f32 %v768, 1e-05
    %v770 = vrsqrt.pop %v769
    %v771 = vmul.f32 %v760, %v770
    %v772 = vtanh.pop %v771
    %v773 = vld [vmem:[%s1 + $0x380] sm:$0xff]
    %v774 = vld [vmem:[%s1 + $0x388] sm:$0xff]
    %v775 = vld [vmem:[%s1 + $0x390] sm:$0xff]
    %v776 = vld [vmem:[%s1 + $0x398] sm:$0xff]
    %v777 = vld [vmem:[%s1 + $0x3a0] sm:$0xff]
    %v778 = vld [vmem:[%s1 + $0x3a8] sm:$0xff]
    %v779 = vld [vmem:[%s1 + $0x3b0] sm:$0xff]
    %v780 = vld [vmem:[%s1 + $0x3b8] sm:$0xff]
    %v781 = vld [vmem:[%s1 + $0x3c0] sm:$0xff]
    %v782 = vld [vmem:[%s1 + $0x3c8] sm:$0xff]
    %v783 = vld [vmem:[%s1 + $0x3d0] sm:$0xff]
    %v784 = vld [vmem:[%s1 + $0x3d8] sm:$0xff]
    %v785 = vld [vmem:[%s1 + $0x3e0] sm:$0xff]
    %v786 = vld [vmem:[%s1 + $0x3e8] sm:$0xff]
    %v787 = vld [vmem:[%s1 + $0x3f0] sm:$0xff]
    %v788 = vld [vmem:[%s1 + $0x3f8] sm:$0xff]
    %v789 = vld [vmem:[%s2 + $0x5] sm:$0x1]
    %v790 = vlaneseq
    %v791 = vshrl.u32 %v790, 7
    %v792 = vsub.s32 0, %v791
    %v793 = vrot.slane %v789, %v792
    %794 = vmatprep.subr.mxu0 0.0
    %795 = vmatpush1.msra.mxu0 %v788
    %796 = vmatprep.subr.mxu0 0.0
    %797 = vmatpush1.msra.mxu0 %v787
    %798 = vmatprep.subr.mxu0 0.0
    %799 = vmatpush1.msra.mxu0 %v786
    %800 = vmatprep.subr.mxu0 0.0
    %801 = vmatpush1.msra.mxu0 %v785
    %802 = vmatprep.subr.mxu0 0.0
    %803 = vmatpush1.msra.mxu0 %v784
    %804 = vmatprep.subr.mxu0 0.0
    %805 = vmatpush1.msra.mxu0 %v783
    %806 = vmatprep.subr.mxu0 0.0
    %807 = vmatpush1.msra.mxu0 %v782
    %808 = vmatprep.subr.mxu0 0.0
    %809 = vmatpush1.msra.mxu0 %v781
    %810 = vmatprep.subr.mxu0 0.0
    %811 = vmatpush1.msra.mxu0 %v780
    %812 = vmatprep.subr.mxu0 0.0
    %813 = vmatpush1.msra.mxu0 %v779
    %814 = vmatprep.subr.mxu0 0.0
    %815 = vmatpush1.msra.mxu0 %v778
    %816 = vmatprep.subr.mxu0 0.0
    %817 = vmatpush1.msra.mxu0 %v777
    %818 = vmatprep.subr.mxu0 0.0
    %819 = vmatpush1.msra.mxu0 %v776
    %820 = vmatprep.subr.mxu0 0.0
    %821 = vmatpush1.msra.mxu0 %v775
    %822 = vmatprep.subr.mxu0 0.0
    %823 = vmatpush1.msra.mxu0 %v774
    %824 = vmatprep.subr.mxu0 0.0
    %825 = vmatpush1.msra.mxu0 %v773
    %826 = vmatprep.subr.mxu0 0.0
    %827 = vmatpush2.msra.mxu0 0.0
    %828 = vmatprep.subr.mxu0 0.0
    %829 = vmatpush2.msra.mxu0 0.0
    %830 = vmatprep.subr.mxu0 0.0
    %831 = vmatpush2.msra.mxu0 0.0
    %832 = vmatprep.subr.mxu0 0.0
    %833 = vmatpush2.msra.mxu0 0.0
    %834 = vmatprep.subr.mxu0 0.0
    %835 = vmatpush2.msra.mxu0 0.0
    %836 = vmatprep.subr.mxu0 0.0
    %837 = vmatpush2.msra.mxu0 0.0
    %838 = vmatprep.subr.mxu0 0.0
    %839 = vmatpush2.msra.mxu0 0.0
    %840 = vmatprep.subr.mxu0 0.0
    %841 = vmatpush2.msra.mxu0 0.0
    %842 = vmatprep.subr.mxu0 0.0
    %843 = vmatpush2.msra.mxu0 0.0
    %844 = vmatprep.subr.mxu0 0.0
    %845 = vmatpush2.msra.mxu0 0.0
    %846 = vmatprep.subr.mxu0 0.0
    %847 = vmatpush2.msra.mxu0 0.0
    %848 = vmatprep.subr.mxu0 0.0
    %849 = vmatpush2.msra.mxu0 0.0
    %850 = vmatprep.subr.mxu0 0.0
    %851 = vmatpush2.msra.mxu0 0.0
    %852 = vmatprep.subr.mxu0 0.0
    %853 = vmatpush2.msra.mxu0 0.0
    %854 = vmatprep.subr.mxu0 0.0
    %855 = vmatpush2.msra.mxu0 0.0
    %856 = vmatprep.subr.mxu0 0.0
    %857 = vmatpush2.msra.mxu0 0.0
    %858 = vmatprep.mubr.f32.mxu0 0.0
    %859 = vmatmul.mubr.f32.gmra.mxu0 %v772
    %v860 = vpop.f32.mrf.mxu0
    %v861 = vadd.f32 %v793, %v860
    %v862 = vpop.f32.mrf.mxu0
    %863 = vdwg.mxu0
    %v864 = vrot.slane %v861, 4
    %v865 = vadd.f32 %v861, %v864
    %v866 = vrot.slane %v865, 2
    %v867 = vadd.f32 %v865, %v866
    %v868 = vrot.slane %v867, 1
    %v869 = vadd.f32 %v867, %v868
    %v870 = vmul.f32 %v869, %v116
    %v871 = vsub.f32 %v861, %v870
    %v872 = vmul.f32 %v871, %v871
    %v873 = vrot.slane %v872, 4
    %v874 = vadd.f32 %v872, %v873
    %v875 = vrot.slane %v874, 2
    %v876 = vadd.f32 %v874, %v875
    %v877 = vrot.slane %v876, 1
    %v878 = vadd.f32 %v876, %v877
    %v879 = vmul.f32 %v878, %v116
    %v880 = vadd.f32 %v879, 1e-05
    %v881 = vrsqrt.pop %v880
    %v882 = vmul.f32 %v871, %v881
    %v883 = vtanh.pop %v882
    %v884 = vld [vmem:[%s1 + $0x400] sm:$0xff]
    %v885 = vld [vmem:[%s1 + $0x408] sm:$0xff]
    %v886 = vld [vmem:[%s1 + $0x410] sm:$0xff]
    %v887 = vld [vmem:[%s1 + $0x418] sm:$0xff]
    %v888 = vld [vmem:[%s1 + $0x420] sm:$0xff]
    %v889 = vld [vmem:[%s1 + $0x428] sm:$0xff]
    %v890 = vld [vmem:[%s1 + $0x430] sm:$0xff]
    %v891 = vld [vmem:[%s1 + $0x438] sm:$0xff]
    %v892 = vld [vmem:[%s1 + $0x440] sm:$0xff]
    %v893 = vld [vmem:[%s1 + $0x448] sm:$0xff]
    %v894 = vld [vmem:[%s1 + $0x450] sm:$0xff]
    %v895 = vld [vmem:[%s1 + $0x458] sm:$0xff]
    %v896 = vld [vmem:[%s1 + $0x460] sm:$0xff]
    %v897 = vld [vmem:[%s1 + $0x468] sm:$0xff]
    %v898 = vld [vmem:[%s1 + $0x470] sm:$0xff]
    %v899 = vld [vmem:[%s1 + $0x478] sm:$0xff]
    %v900 = vld [vmem:[%s2 + $0x6] sm:$0x1]
    %v901 = vlaneseq
    %v902 = vshrl.u32 %v901, 7
    %v903 = vsub.s32 0, %v902
    %v904 = vrot.slane %v900, %v903
    %905 = vmatprep.subr.mxu0 0.0
    %906 = vmatpush1.msra.mxu0 %v899
    %907 = vmatprep.subr.mxu0 0.0
    %908 = vmatpush1.msra.mxu0 %v898
    %909 = vmatprep.subr.mxu0 0.0
    %910 = vmatpush1.msra.mxu0 %v897
    %911 = vmatprep.subr.mxu0 0.0
    %912 = vmatpush1.msra.mxu0 %v896
    %913 = vmatprep.subr.mxu0 0.0
    %914 = vmatpush1.msra.mxu0 %v895
    %915 = vmatprep.subr.mxu0 0.0
    %916 = vmatpush1.msra.mxu0 %v894
    %917 = vmatprep.subr.mxu0 0.0
    %918 = vmatpush1.msra.mxu0 %v893
    %919 = vmatprep.subr.mxu0 0.0
    %920 = vmatpush1.msra.mxu0 %v892
    %921 = vmatprep.subr.mxu0 0.0
    %922 = vmatpush1.msra.mxu0 %v891
    %923 = vmatprep.subr.mxu0 0.0
    %924 = vmatpush1.msra.mxu0 %v890
    %925 = vmatprep.subr.mxu0 0.0
    %926 = vmatpush1.msra.mxu0 %v889
    %927 = vmatprep.subr.mxu0 0.0
    %928 = vmatpush1.msra.mxu0 %v888
    %929 = vmatprep.subr.mxu0 0.0
    %930 = vmatpush1.msra.mxu0 %v887
    %931 = vmatprep.subr.mxu0 0.0
    %932 = vmatpush1.msra.mxu0 %v886
    %933 = vmatprep.subr.mxu0 0.0
    %934 = vmatpush1.msra.mxu0 %v885
    %935 = vmatprep.subr.mxu0 0.0
    %936 = vmatpush1.msra.mxu0 %v884
    %937 = vmatprep.subr.mxu0 0.0
    %938 = vmatpush2.msra.mxu0 0.0
    %939 = vmatprep.subr.mxu0 0.0
    %940 = vmatpush2.msra.mxu0 0.0
    %941 = vmatprep.subr.mxu0 0.0
    %942 = vmatpush2.msra.mxu0 0.0
    %943 = vmatprep.subr.mxu0 0.0
    %944 = vmatpush2.msra.mxu0 0.0
    %945 = vmatprep.subr.mxu0 0.0
    %946 = vmatpush2.msra.mxu0 0.0
    %947 = vmatprep.subr.mxu0 0.0
    %948 = vmatpush2.msra.mxu0 0.0
    %949 = vmatprep.subr.mxu0 0.0
    %950 = vmatpush2.msra.mxu0 0.0
    %951 = vmatprep.subr.mxu0 0.0
    %952 = vmatpush2.msra.mxu0 0.0
    %953 = vmatprep.subr.mxu0 0.0
    %954 = vmatpush2.msra.mxu0 0.0
    %955 = vmatprep.subr.mxu0 0.0
    %956 = vmatpush2.msra.mxu0 0.0
    %957 = vmatprep.subr.mxu0 0.0
    %958 = vmatpush2.msra.mxu0 0.0
    %959 = vmatprep.subr.mxu0 0.0
    %960 = vmatpush2.msra.mxu0 0.0
    %961 = vmatprep.subr.mxu0 0.0
    %962 = vmatpush2.msra.mxu0 0.0
    %963 = vmatprep.subr.mxu0 0.0
    %964 = vmatpush2.msra.mxu0 0.0
    %965 = vmatprep.subr.mxu0 0.0
    %966 = vmatpush2.msra.mxu0 0.0
    %967 = vmatprep.subr.mxu0 0.0
    %968 = vmatpush2.msra.mxu0 0.0
    %969 = vmatprep.mubr.f32.mxu0 0.0
    %970 = vmatmul.mubr.f32.gmra.mxu0 %v883
    %v971 = vpop.f32.mrf.mxu0
    %v972 = vadd.f32 %v904, %v971
    %v973 = vpop.f32.mrf.mxu0
    %974 = vdwg.mxu0
    %v975 = vrot.slane %v972, 4
    %v976 = vadd.f32 %v972, %v975
    %v977 = vrot.slane %v976, 2
    %v978 = vadd.f32 %v976, %v977
    %v979 = vrot.slane %v978, 1
    %v980 = vadd.f32 %v978, %v979
    %v981 = vmul.f32 %v980, %v116
    %v982 = vsub.f32 %v972, %v981
    %v983 = vmul.f32 %v982, %v982
    %v984 = vrot.slane %v983, 4
    %v985 = vadd.f32 %v983, %v984
    %v986 = vrot.slane %v985, 2
    %v987 = vadd.f32 %v985, %v986
    %v988 = vrot.slane %v987, 1
    %v989 = vadd.f32 %v987, %v988
    %v990 = vmul.f32 %v989, %v116
    %v991 = vadd.f32 %v990, 1e-05
    %v992 = vrsqrt.pop %v991
    %v993 = vmul.f32 %v982, %v992
    %v994 = vtanh.pop %v993
    %v995 = vld [vmem:[%s1 + $0x480] sm:$0xff]
    %v996 = vld [vmem:[%s1 + $0x488] sm:$0xff]
    %v997 = vld [vmem:[%s1 + $0x490] sm:$0xff]
    %v998 = vld [vmem:[%s1 + $0x498] sm:$0xff]
    %v999 = vld [vmem:[%s1 + $0x4a0] sm:$0xff]
    %v1000 = vld [vmem:[%s1 + $0x4a8] sm:$0xff]
    %v1001 = vld [vmem:[%s1 + $0x4b0] sm:$0xff]
    %v1002 = vld [vmem:[%s1 + $0x4b8] sm:$0xff]
    %v1003 = vld [vmem:[%s1 + $0x4c0] sm:$0xff]
    %v1004 = vld [vmem:[%s1 + $0x4c8] sm:$0xff]
    %v1005 = vld [vmem:[%s1 + $0x4d0] sm:$0xff]
    %v1006 = vld [vmem:[%s1 + $0x4d8] sm:$0xff]
    %v1007 = vld [vmem:[%s1 + $0x4e0] sm:$0xff]
    %v1008 = vld [vmem:[%s1 + $0x4e8] sm:$0xff]
    %v1009 = vld [vmem:[%s1 + $0x4f0] sm:$0xff]
    %v1010 = vld [vmem:[%s1 + $0x4f8] sm:$0xff]
    %v1011 = vld [vmem:[%s2 + $0x7] sm:$0x1]
    %v1012 = vlaneseq
    %v1013 = vshrl.u32 %v1012, 7
    %v1014 = vsub.s32 0, %v1013
    %v1015 = vrot.slane %v1011, %v1014
    %1016 = vmatprep.subr.mxu0 0.0
    %1017 = vmatpush1.msra.mxu0 %v1010
    %1018 = vmatprep.subr.mxu0 0.0
    %1019 = vmatpush1.msra.mxu0 %v1009
    %1020 = vmatprep.subr.mxu0 0.0
    %1021 = vmatpush1.msra.mxu0 %v1008
    %1022 = vmatprep.subr.mxu0 0.0
    %1023 = vmatpush1.msra.mxu0 %v1007
    %1024 = vmatprep.subr.mxu0 0.0
    %1025 = vmatpush1.msra.mxu0 %v1006
    %1026 = vmatprep.subr.mxu0 0.0
    %1027 = vmatpush1.msra.mxu0 %v1005
    %1028 = vmatprep.subr.mxu0 0.0
    %1029 = vmatpush1.msra.mxu0 %v1004
    %1030 = vmatprep.subr.mxu0 0.0
    %1031 = vmatpush1.msra.mxu0 %v1003
    %1032 = vmatprep.subr.mxu0 0.0
    %1033 = vmatpush1.msra.mxu0 %v1002
    %1034 = vmatprep.subr.mxu0 0.0
    %1035 = vmatpush1.msra.mxu0 %v1001
    %1036 = vmatprep.subr.mxu0 0.0
    %1037 = vmatpush1.msra.mxu0 %v1000
    %1038 = vmatprep.subr.mxu0 0.0
    %1039 = vmatpush1.msra.mxu0 %v999
    %1040 = vmatprep.subr.mxu0 0.0
    %1041 = vmatpush1.msra.mxu0 %v998
    %1042 = vmatprep.subr.mxu0 0.0
    %1043 = vmatpush1.msra.mxu0 %v997
    %1044 = vmatprep.subr.mxu0 0.0
    %1045 = vmatpush1.msra.mxu0 %v996
    %1046 = vmatprep.subr.mxu0 0.0
    %1047 = vmatpush1.msra.mxu0 %v995
    %1048 = vmatprep.subr.mxu0 0.0
    %1049 = vmatpush2.msra.mxu0 0.0
    %1050 = vmatprep.subr.mxu0 0.0
    %1051 = vmatpush2.msra.mxu0 0.0
    %1052 = vmatprep.subr.mxu0 0.0
    %1053 = vmatpush2.msra.mxu0 0.0
    %1054 = vmatprep.subr.mxu0 0.0
    %1055 = vmatpush2.msra.mxu0 0.0
    %1056 = vmatprep.subr.mxu0 0.0
    %1057 = vmatpush2.msra.mxu0 0.0
    %1058 = vmatprep.subr.mxu0 0.0
    %1059 = vmatpush2.msra.mxu0 0.0
    %1060 = vmatprep.subr.mxu0 0.0
    %1061 = vmatpush2.msra.mxu0 0.0
    %1062 = vmatprep.subr.mxu0 0.0
    %1063 = vmatpush2.msra.mxu0 0.0
    %1064 = vmatprep.subr.mxu0 0.0
    %1065 = vmatpush2.msra.mxu0 0.0
    %1066 = vmatprep.subr.mxu0 0.0
    %1067 = vmatpush2.msra.mxu0 0.0
    %1068 = vmatprep.subr.mxu0 0.0
    %1069 = vmatpush2.msra.mxu0 0.0
    %1070 = vmatprep.subr.mxu0 0.0
    %1071 = vmatpush2.msra.mxu0 0.0
    %1072 = vmatprep.subr.mxu0 0.0
    %1073 = vmatpush2.msra.mxu0 0.0
    %1074 = vmatprep.subr.mxu0 0.0
    %1075 = vmatpush2.msra.mxu0 0.0
    %1076 = vmatprep.subr.mxu0 0.0
    %1077 = vmatpush2.msra.mxu0 0.0
    %1078 = vmatprep.subr.mxu0 0.0
    %1079 = vmatpush2.msra.mxu0 0.0
    %1080 = vmatprep.mubr.f32.mxu0 0.0
    %1081 = vmatmul.mubr.f32.gmra.mxu0 %v994
    %v1082 = vpop.f32.mrf.mxu0
    %v1083 = vadd.f32 %v1015, %v1082
    %v1084 = vpop.f32.mrf.mxu0
    %1085 = vdwg.mxu0
    %v1086 = vrot.slane %v1083, 4
    %v1087 = vadd.f32 %v1083, %v1086
    %v1088 = vrot.slane %v1087, 2
    %v1089 = vadd.f32 %v1087, %v1088
    %v1090 = vrot.slane %v1089, 1
    %v1091 = vadd.f32 %v1089, %v1090
    %v1092 = vmul.f32 %v1091, %v116
    %v1093 = vsub.f32 %v1083, %v1092
    %v1094 = vmul.f32 %v1093, %v1093
    %v1095 = vrot.slane %v1094, 4
    %v1096 = vadd.f32 %v1094, %v1095
    %v1097 = vrot.slane %v1096, 2
    %v1098 = vadd.f32 %v1096, %v1097
    %v1099 = vrot.slane %v1098, 1
    %v1100 = vadd.f32 %v1098, %v1099
    %v1101 = vmul.f32 %v1100, %v116
    %v1102 = vadd.f32 %v1101, 1e-05
    %v1103 = vrsqrt.pop %v1102
    %v1104 = vmul.f32 %v1093, %v1103
    %v1105 = vtanh.pop %v1104
    %1106 = vst [vmem:[#allocation2] sm:$0xff] %v1105
    %1107 = vst [vmem:[#allocation4] sm:$0xff] %v575
    // Predicated region
    $region14: #{memae_forward.1} parent=1 // pred_check
      _
    $region15: #{memae_forward.1} parent=1 // pred_check_branch
      %1109 = sbr.rel (0) target = $region17
    $region16: #{memae_forward.1} parent=1 // pred_region
      %s1111 = ssub.s32 128, 128
      %1112 = vsyncadd [#allocation3], %s1111
      %s1114 = sshll.u32 [#allocation2], 4
      %s1115 = int_to_ptr.vmem [resolvable:$true] %s1114
      %1117 = dma.vmem_to_hbm [thread:$0]  %s1115, 128, %s3, [#allocation3]
    $region17: #{memae_forward.1} parent=1 // pred_fallthru
      _
    // Predicated region
    $region18: #{memae_forward.1} parent=1 // pred_check
      _
    $region19: #{memae_forward.1} parent=1 // pred_check_branch
      %1119 = sbr.rel (0) target = $region21
    $region20: #{memae_forward.1} parent=1 // pred_region
      %s1121 = ssub.s32 128, 128
      %1122 = vsyncadd [#allocation5], %s1121
      %s1124 = sshll.u32 [#allocation4], 4
      %s1125 = int_to_ptr.vmem [resolvable:$true] %s1124
      %1127 = dma.vmem_to_hbm [thread:$0]  %s1125, 128, %s4, [#allocation5]
    $region21: #{memae_forward.1} parent=1 // pred_fallthru
      _
    // Predicated region
    $region22: #{memae_forward.1} parent=1 // pred_check
      _
    $region23: #{memae_forward.1} parent=1 // pred_check_branch
      %1129 = sbr.rel (0) target = $region25
    $region24: #{memae_forward.1} parent=1 // pred_region
      %1130 = dma.done [#allocation3], 128
    $region25: #{memae_forward.1} parent=1 // pred_fallthru
      _
    // Predicated region
    $region26: #{memae_forward.1} parent=1 // pred_check
      _
    $region27: #{memae_forward.1} parent=1 // pred_check_branch
      %1132 = sbr.rel (0) target = $region29
    $region28: #{memae_forward.1} parent=1 // pred_region
      %1133 = dma.done [#allocation5], 128
    $region29: #{memae_forward.1} parent=1 // pred_fallthru
      _
    %1134 = vsyncpa [#allocation3], 1
    %1135 = vsyncpa [#allocation5], 1

</llo_original>
